<compile_context>
chip_gen: v7x
topology: tpu7x:2x2x1
jax: 0.10.0
libtpu: 0.0.40
codegen_flags: <defaults>
</compile_context>

<pallas_src>
import jax
import jax.numpy as jnp
from jax import lax
from jax.experimental import pallas as pl
from jax.experimental.pallas import tpu as pltpu


def _round_up(x, m):
    return ((x + m - 1) // m) * m


def _detect_vmem_capacity_bytes():
    """Trace-time TPU VMEM capacity query; returns None if unavailable."""
    try:
        info = pltpu.get_tpu_info()
        cap = getattr(info, "vmem_capacity_bytes", None)
        return int(cap) if cap else None
    except Exception:
        return None


def _linear_kernel(x_ref, w_ref, b_ref, o_ref):
    # x_ref: (tm, K)   w_ref: (N, K)  (PyTorch layout, K on lanes -> lane-dense)
    # b_ref: (1, N) f32   o_ref: (tm, N)
    # trans_b contraction: contract K of x with K of w -> (tm, N) f32 accumulator.
    # TODO(synk): if a bundle dump ever shows a per-grid-step XLU transpose of the
    # (N, K) weight on the critical path, precompute W^T (K, N) in the wrapper.
    acc = lax.dot_general(
        x_ref[...],
        w_ref[...],
        dimension_numbers=(((1,), (1,)), ((), ())),  # x @ W.T
        preferred_element_type=jnp.float32,
    )
    o_ref[...] = (acc + b_ref[...]).astype(o_ref.dtype)


def net0_forward(text, weight, bias, *, tm=None, activation_dtype=None):
    """text: (B, K); weight: (N, K) (PyTorch layout); bias: (N,).

    activation_dtype: optionally jnp.bfloat16 to halve HBM traffic on x/W
    (f32 accumulation and f32 bias add are preserved; output keeps text.dtype).
    """
    B, K = text.shape
    N, K_w = weight.shape
    assert K == K_w, "feature dims must match"

    out_dtype = text.dtype

    # Optional bandwidth-saving cast (review item: HBM-bound on reading x).
    if activation_dtype is not None and activation_dtype != text.dtype:
        text = text.astype(activation_dtype)
        weight = weight.astype(activation_dtype)
    sublane = 16 if text.dtype == jnp.bfloat16 else 8

    # Generation-aware defaults.
    vmem_cap = _detect_vmem_capacity_bytes()
    if vmem_cap is not None and vmem_cap > 96 * 1024 * 1024:
        # v5e / v6e: 128 MiB VMEM, single TensorCore -> biggest tile wins.
        tm_cap = 1024
        split_cores = 1
        vmem_limit = 64 * 1024 * 1024
    else:
        # v7x (64 MiB VMEM, 2 TensorCores) or unknown: keep tiles modest and
        # make the parallel batch axis splittable across both cores.
        tm_cap = 512
        split_cores = 2
        vmem_limit = 48 * 1024 * 1024

    if tm is None:
        rows_per_core = pl.cdiv(B, split_cores)
        tm = min(tm_cap, max(sublane, _round_up(rows_per_core, sublane)))
    else:
        tm = max(sublane, min(tm, _round_up(B, sublane)))
    tm = _round_up(tm, sublane)

    grid = (pl.cdiv(B, tm),)  # ragged batch: final partial block masked by Pallas

    b2d = bias.astype(jnp.float32).reshape(1, N)  # 2-D, f32 for the bias add

    x_bytes = text.dtype.itemsize
    w_bytes = weight.dtype.itemsize
    cost = pl.CostEstimate(
        flops=2 * B * K * N,
        transcendentals=0,
        bytes_accessed=B * K * x_bytes + N * K * w_bytes + N * 4 + B * N * 4,
    )

    return pl.pallas_call(
        _linear_kernel,
        out_shape=jax.ShapeDtypeStruct((B, N), out_dtype),
        grid_spec=pltpu.PrefetchScalarGridSpec(
            num_scalar_prefetch=0,
            grid=grid,
            in_specs=[
                pl.BlockSpec((tm, K), lambda i: (i, 0)),  # batch-tiled activations
                pl.BlockSpec((N, K), lambda i: (0, 0)),   # full weight, lane-dense
                pl.BlockSpec((1, N), lambda i: (0, 0)),   # bias
            ],
            out_specs=pl.BlockSpec((tm, N), lambda i: (i, 0)),
        ),
        compiler_params=pltpu.CompilerParams(
            dimension_semantics=("parallel",),
            vmem_limit_bytes=vmem_limit,
        ),
        cost_estimate=cost,
    )(text, weight, b2d)


if __name__ == "__main__":
    INPUT_DIM = 200 * 30   # 6000, as in NET0.__init__
    NUM_CLASSES = 5
    BATCH = 8

    key = jax.random.PRNGKey(0)
    k_x, k_w, k_b = jax.random.split(key, 3)

    # Deterministic parameter init mirroring nn.Linear's default
    # (uniform in [-1/sqrt(fan_in), 1/sqrt(fan_in)]).
    bound = 1.0 / jnp.sqrt(jnp.float32(INPUT_DIM))
    weight = jax.random.uniform(
        k_w, (NUM_CLASSES, INPUT_DIM), jnp.float32, minval=-bound, maxval=bound
    )
    bias = jax.random.uniform(
        k_b, (NUM_CLASSES,), jnp.float32, minval=-bound, maxval=bound
    )
    text = jax.random.normal(k_x, (BATCH, INPUT_DIM), jnp.float32)

    ref = text @ weight.T + bias

    # Default (f32) path: exact PyTorch-Linear semantics.
    out = jax.block_until_ready(net0_forward(text, weight, bias))
    assert out.shape == (BATCH, NUM_CLASSES)
    assert jnp.allclose(out, ref, atol=1e-4, rtol=1e-4)

    # Optional bf16-activation path (bandwidth optimization): f32 accumulation,
    # checked at a tolerance appropriate for bf16 inputs.
    out_bf16 = jax.block_until_ready(
        net0_forward(text, weight, bias, activation_dtype=jnp.bfloat16)
    )
    assert out_bf16.shape == (BATCH, NUM_CLASSES)
    assert jnp.allclose(out_bf16, ref, atol=5e-2, rtol=5e-2)

    print("KERNEL_OK")
</pallas_src>

<mosaic_0001>
module attributes {stable_mosaic.version = 11 : i64} {
  func.func @_linear_kernel(%arg0: i32, %arg1: memref<8x6000xf32, #tpu.memory_space<vmem>>, %arg2: memref<5x6000xf32, #tpu.memory_space<vmem>>, %arg3: memref<1x5xf32, #tpu.memory_space<vmem>>, %arg4: memref<8x5xf32, #tpu.memory_space<vmem>>) attributes {dimension_semantics = [#tpu.dimension_semantics<parallel>], iteration_bounds = array<i64: 1>, scalar_prefetch = 0 : i64, scratch_operands = 0 : i64, tpu.core_type = #tpu.core_type<tc>, window_params = [{transform_indices = @transform_0, window_bounds = array<i64: 8, 6000>}, {pipeline_mode = #tpu.pipeline_mode<synchronous>, transform_indices = @transform_1, window_bounds = array<i64: 5, 6000>}, {pipeline_mode = #tpu.pipeline_mode<synchronous>, transform_indices = @transform_2, window_bounds = array<i64: 1, 5>}, {transform_indices = @transform_3, window_bounds = array<i64: 8, 5>}]} {
    %c0 = arith.constant 0 : index
    %c0_0 = arith.constant 0 : index
    %0 = vector.load %arg1[%c0, %c0_0] : memref<8x6000xf32, #tpu.memory_space<vmem>>, vector<8x6000xf32>
    %c0_1 = arith.constant 0 : index
    %c0_2 = arith.constant 0 : index
    %1 = vector.load %arg2[%c0_1, %c0_2] : memref<5x6000xf32, #tpu.memory_space<vmem>>, vector<5x6000xf32>
    %cst = arith.constant dense<0.000000e+00> : vector<8x5xf32>
    %2 = tpu.matmul %0, %1, %cst {dimension_numbers = #tpu.dot_dimension_numbers<[1], [1], [0], [0], [0, 0, 1, 0], [], []>} : vector<8x6000xf32>, vector<5x6000xf32>, vector<8x5xf32> -> vector<8x5xf32>
    %c0_3 = arith.constant 0 : index
    %c0_4 = arith.constant 0 : index
    %3 = vector.load %arg3[%c0_3, %c0_4] : memref<1x5xf32, #tpu.memory_space<vmem>>, vector<1x5xf32>
    %4 = vector.broadcast %3 : vector<1x5xf32> to vector<8x5xf32>
    %5 = arith.addf %2, %4 : vector<8x5xf32>
    %c0_5 = arith.constant 0 : index
    %c0_6 = arith.constant 0 : index
    %6 = vector.load %arg4[%c0_5, %c0_6] : memref<8x5xf32, #tpu.memory_space<vmem>>, vector<8x5xf32>
    tpu.vector_store %arg4[%c0_5, %c0_6], %5 {strides = array<i32>} : memref<8x5xf32, #tpu.memory_space<vmem>>, vector<8x5xf32>,
    return
  }
  func.func @transform_0(%arg0: i32) -> (i32, i32) {
    %c0_i32 = arith.constant 0 : i32
    %c0_i32_0 = arith.constant 0 : i32
    return %arg0, %c0_i32 : i32, i32
  }
  func.func @transform_1(%arg0: i32) -> (i32, i32) {
    %c0_i32 = arith.constant 0 : i32
    %c0_i32_0 = arith.constant 0 : i32
    %c0_i32_1 = arith.constant 0 : i32
    return %c0_i32, %c0_i32_0 : i32, i32
  }
  func.func @transform_2(%arg0: i32) -> (i32, i32) {
    %c0_i32 = arith.constant 0 : i32
    %c0_i32_0 = arith.constant 0 : i32
    %c0_i32_1 = arith.constant 0 : i32
    return %c0_i32, %c0_i32_0 : i32, i32
  }
  func.func @transform_3(%arg0: i32) -> (i32, i32) {
    %c0_i32 = arith.constant 0 : i32
    %c0_i32_0 = arith.constant 0 : i32
    return %arg0, %c0_i32 : i32, i32
  }
}

</mosaic_0001>

<llo_original>
// kernel: tpu_custom_call.1
$region0: #{tpu_custom_call.1}
  #allocation0 [shape = 'u32[]', space=smem, size = 0x4, offset = 0x4, fixed_abs, tag = 'smem constant byte address 0x4 - core index']
  #allocation1 [shape = 'u32[144,128]{1,0:T(1,128)}', space=vmem, size = 0x12000, scoped, tag = 'internal scratch']
  %s0 = inlined_call_operand.hbm [shape: f32[8,6000], index: 0, kind: input, shape index: {}]
  %s1 = inlined_call_operand.hbm [shape: f32[5,6000], index: 1, kind: input, shape index: {}]
  %s2 = inlined_call_operand.vmem [shape: f32[1,5], index: 2, kind: input, shape index: {}]
  %s3 = inlined_call_operand.hbm [shape: f32[8,5], index: 3, kind: output, shape index: {}]
  %s4 = sld [smem:[#allocation0]]
  $region30: #{tpu_custom_call.1} parent=0
    _
  %s6 = ssub.s32 1, %s4
  %s7 = scalar_select 0, %s6, %s4
  $region1: #{tpu_custom_call.1} parent=0
    #allocation2 [shape = 'u8[192512]{0}', space=vmem, size = 0x2f000, scoped, tag = 'input window, operand 0, single buffered']
    #allocation3 [shape = 's32[1]{0}', space=sflag, size = 0x4, scoped, tag = 'scoped memory for tpu_custom_call.1']
    #allocation4 [shape = 's32[1]{0}', space=sflag, size = 0x4, scoped, tag = 'scoped memory for tpu_custom_call.1']
    #allocation5 [shape = 'u8[192512]{0}', space=vmem, size = 0x2f000, scoped, tag = 'input window, operand 1, single buffered']
    #allocation6 [shape = 's32[1]{0}', space=sflag, size = 0x4, scoped, tag = 'scoped memory for tpu_custom_call.1']
    #allocation7 [shape = 'u8[4096]{0}', space=vmem, size = 0x1000, scoped, tag = 'output window, operand 0, single buffered']
    %8 = vsyncpa [#allocation3], 0
    %9 = vsyncpa [#allocation6], 0
    %10 = vsyncpa [#allocation4], 0
    // Predicated region
    $region2: #{tpu_custom_call.1} parent=1 // pred_check
      _
    $region3: #{tpu_custom_call.1} parent=1 // pred_check_branch
      %12 = sbr.rel (0) target = $region5
    $region4: #{tpu_custom_call.1} parent=1 // pred_region
      %s14 = ssub.s32 6016, 6016
      %15 = vsyncadd [#allocation3], %s14
      %s17 = sshll.u32 [#allocation2], 4
      %s18 = int_to_ptr.vmem [resolvable:$true] %s17
      %20 = dma.hbm_to_vmem [thread:$0]  %s0, 6016, %s18, [#allocation3]
    $region5: #{tpu_custom_call.1} parent=1 // pred_fallthru
      _
    // Predicated region
    $region6: #{tpu_custom_call.1} parent=1 // pred_check
      _
    $region7: #{tpu_custom_call.1} parent=1 // pred_check_branch
      %22 = sbr.rel (0) target = $region9
    $region8: #{tpu_custom_call.1} parent=1 // pred_region
      %s24 = ssub.s32 6016, 6016
      %25 = vsyncadd [#allocation6], %s24
      %s27 = sshll.u32 [#allocation5], 4
      %s28 = int_to_ptr.vmem [resolvable:$true] %s27
      %30 = dma.hbm_to_vmem [thread:$0]  %s1, 6016, %s28, [#allocation6]
    $region9: #{tpu_custom_call.1} parent=1 // pred_fallthru
      _
    // Predicated region
    $region10: #{tpu_custom_call.1} parent=1 // pred_check
      _
    $region11: #{tpu_custom_call.1} parent=1 // pred_check_branch
      %32 = sbr.rel (0) target = $region13
    $region12: #{tpu_custom_call.1} parent=1 // pred_region
      _
    $region13: #{tpu_custom_call.1} parent=1 // pred_fallthru
      _
    // Predicated region
    $region14: #{tpu_custom_call.1} parent=1 // pred_check
      _
    $region15: #{tpu_custom_call.1} parent=1 // pred_check_branch
      %34 = sbr.rel (0) target = $region17
    $region16: #{tpu_custom_call.1} parent=1 // pred_region
      %35 = dma.done [#allocation3], 6016
    $region17: #{tpu_custom_call.1} parent=1 // pred_fallthru
      _
    // Predicated region
    $region18: #{tpu_custom_call.1} parent=1 // pred_check
      _
    $region19: #{tpu_custom_call.1} parent=1 // pred_check_branch
      %37 = sbr.rel (0) target = $region21
    $region20: #{tpu_custom_call.1} parent=1 // pred_region
      %38 = dma.done [#allocation6], 6016
    $region21: #{tpu_custom_call.1} parent=1 // pred_fallthru
      _
    %v39 = vld [vmem:[#allocation2] sm:$0xff]
    %v40 = vld [vmem:[#allocation2 + $0x8] sm:$0xff]
    %v41 = vld [vmem:[#allocation2 + $0x10] sm:$0xff]
    %v42 = vld [vmem:[#allocation2 + $0x18] sm:$0xff]
    %v43 = vld [vmem:[#allocation2 + $0x20] sm:$0xff]
    %v44 = vld [vmem:[#allocation2 + $0x28] sm:$0xff]
    %v45 = vld [vmem:[#allocation2 + $0x30] sm:$0xff]
    %v46 = vld [vmem:[#allocation2 + $0x38] sm:$0xff]
    %v47 = vld [vmem:[#allocation2 + $0x40] sm:$0xff]
    %v48 = vld [vmem:[#allocation2 + $0x48] sm:$0xff]
    %v49 = vld [vmem:[#allocation2 + $0x50] sm:$0xff]
    %v50 = vld [vmem:[#allocation2 + $0x58] sm:$0xff]
    %v51 = vld [vmem:[#allocation2 + $0x60] sm:$0xff]
    %v52 = vld [vmem:[#allocation2 + $0x68] sm:$0xff]
    %v53 = vld [vmem:[#allocation2 + $0x70] sm:$0xff]
    %v54 = vld [vmem:[#allocation2 + $0x78] sm:$0xff]
    %v55 = vld [vmem:[#allocation2 + $0x80] sm:$0xff]
    %v56 = vld [vmem:[#allocation2 + $0x88] sm:$0xff]
    %v57 = vld [vmem:[#allocation2 + $0x90] sm:$0xff]
    %v58 = vld [vmem:[#allocation2 + $0x98] sm:$0xff]
    %v59 = vld [vmem:[#allocation2 + $0xa0] sm:$0xff]
    %v60 = vld [vmem:[#allocation2 + $0xa8] sm:$0xff]
    %v61 = vld [vmem:[#allocation2 + $0xb0] sm:$0xff]
    %v62 = vld [vmem:[#allocation2 + $0xb8] sm:$0xff]
    %v63 = vld [vmem:[#allocation2 + $0xc0] sm:$0xff]
    %v64 = vld [vmem:[#allocation2 + $0xc8] sm:$0xff]
    %v65 = vld [vmem:[#allocation2 + $0xd0] sm:$0xff]
    %v66 = vld [vmem:[#allocation2 + $0xd8] sm:$0xff]
    %v67 = vld [vmem:[#allocation2 + $0xe0] sm:$0xff]
    %v68 = vld [vmem:[#allocation2 + $0xe8] sm:$0xff]
    %v69 = vld [vmem:[#allocation2 + $0xf0] sm:$0xff]
    %v70 = vld [vmem:[#allocation2 + $0xf8] sm:$0xff]
    %v71 = vld [vmem:[#allocation2 + $0x100] sm:$0xff]
    %v72 = vld [vmem:[#allocation2 + $0x108] sm:$0xff]
    %v73 = vld [vmem:[#allocation2 + $0x110] sm:$0xff]
    %v74 = vld [vmem:[#allocation2 + $0x118] sm:$0xff]
    %v75 = vld [vmem:[#allocation2 + $0x120] sm:$0xff]
    %v76 = vld [vmem:[#allocation2 + $0x128] sm:$0xff]
    %v77 = vld [vmem:[#allocation2 + $0x130] sm:$0xff]
    %v78 = vld [vmem:[#allocation2 + $0x138] sm:$0xff]
    %v79 = vld [vmem:[#allocation2 + $0x140] sm:$0xff]
    %v80 = vld [vmem:[#allocation2 + $0x148] sm:$0xff]
    %v81 = vld [vmem:[#allocation2 + $0x150] sm:$0xff]
    %v82 = vld [vmem:[#allocation2 + $0x158] sm:$0xff]
    %v83 = vld [vmem:[#allocation2 + $0x160] sm:$0xff]
    %v84 = vld [vmem:[#allocation2 + $0x168] sm:$0xff]
    %v85 = vld [vmem:[#allocation2 + $0x170] sm:$0xff]
    %v86 = vld [vmem:[#allocation5] sm:$0x1f]
    %v87 = vld [vmem:[#allocation5 + $0x8] sm:$0x1f]
    %v88 = vld [vmem:[#allocation5 + $0x10] sm:$0x1f]
    %v89 = vld [vmem:[#allocation5 + $0x18] sm:$0x1f]
    %v90 = vld [vmem:[#allocation5 + $0x20] sm:$0x1f]
    %v91 = vld [vmem:[#allocation5 + $0x28] sm:$0x1f]
    %v92 = vld [vmem:[#allocation5 + $0x30] sm:$0x1f]
    %v93 = vld [vmem:[#allocation5 + $0x38] sm:$0x1f]
    %v94 = vld [vmem:[#allocation5 + $0x40] sm:$0x1f]
    %v95 = vld [vmem:[#allocation5 + $0x48] sm:$0x1f]
    %v96 = vld [vmem:[#allocation5 + $0x50] sm:$0x1f]
    %v97 = vld [vmem:[#allocation5 + $0x58] sm:$0x1f]
    %v98 = vld [vmem:[#allocation5 + $0x60] sm:$0x1f]
    %v99 = vld [vmem:[#allocation5 + $0x68] sm:$0x1f]
    %v100 = vld [vmem:[#allocation5 + $0x70] sm:$0x1f]
    %v101 = vld [vmem:[#allocation5 + $0x78] sm:$0x1f]
    %v102 = vld [vmem:[#allocation5 + $0x80] sm:$0x1f]
    %v103 = vld [vmem:[#allocation5 + $0x88] sm:$0x1f]
    %v104 = vld [vmem:[#allocation5 + $0x90] sm:$0x1f]
    %v105 = vld [vmem:[#allocation5 + $0x98] sm:$0x1f]
    %v106 = vld [vmem:[#allocation5 + $0xa0] sm:$0x1f]
    %v107 = vld [vmem:[#allocation5 + $0xa8] sm:$0x1f]
    %v108 = vld [vmem:[#allocation5 + $0xb0] sm:$0x1f]
    %v109 = vld [vmem:[#allocation5 + $0xb8] sm:$0x1f]
    %v110 = vld [vmem:[#allocation5 + $0xc0] sm:$0x1f]
    %v111 = vld [vmem:[#allocation5 + $0xc8] sm:$0x1f]
    %v112 = vld [vmem:[#allocation5 + $0xd0] sm:$0x1f]
    %v113 = vld [vmem:[#allocation5 + $0xd8] sm:$0x1f]
    %v114 = vld [vmem:[#allocation5 + $0xe0] sm:$0x1f]
    %v115 = vld [vmem:[#allocation5 + $0xe8] sm:$0x1f]
    %v116 = vld [vmem:[#allocation5 + $0xf0] sm:$0x1f]
    %v117 = vld [vmem:[#allocation5 + $0xf8] sm:$0x1f]
    %v118 = vld [vmem:[#allocation5 + $0x100] sm:$0x1f]
    %v119 = vld [vmem:[#allocation5 + $0x108] sm:$0x1f]
    %v120 = vld [vmem:[#allocation5 + $0x110] sm:$0x1f]
    %v121 = vld [vmem:[#allocation5 + $0x118] sm:$0x1f]
    %v122 = vld [vmem:[#allocation5 + $0x120] sm:$0x1f]
    %v123 = vld [vmem:[#allocation5 + $0x128] sm:$0x1f]
    %v124 = vld [vmem:[#allocation5 + $0x130] sm:$0x1f]
    %v125 = vld [vmem:[#allocation5 + $0x138] sm:$0x1f]
    %v126 = vld [vmem:[#allocation5 + $0x140] sm:$0x1f]
    %v127 = vld [vmem:[#allocation5 + $0x148] sm:$0x1f]
    %v128 = vld [vmem:[#allocation5 + $0x150] sm:$0x1f]
    %v129 = vld [vmem:[#allocation5 + $0x158] sm:$0x1f]
    %v130 = vld [vmem:[#allocation5 + $0x160] sm:$0x1f]
    %v131 = vld [vmem:[#allocation5 + $0x168] sm:$0x1f]
    %v132 = vld [vmem:[#allocation5 + $0x170] sm:$0x1f]
    %v133 = vld [vmem:[%s2] sm:$0x1]
    %v135 = vlaneseq
    %v136 = vshrl.u32 %v135, 7
    %v137 = vsub.s32 0, %v136
    %v138 = vrot.slane %v133, %v137
    %vm140 = vcmask 916480
    %v142 = vsel %vm140, %v85, 0
    %v145 = vsel %vm140, %v132, 0
    %147 = vmatprep.subr.mxu0 %v87
    %148 = vmatpush1.xpose.msra.mxu0 %v86
    %149 = vmatprep.subr.mxu0 0.0
    %150 = vmatpush1.xpose.msra.mxu0 0.0
    %151 = vmatprep.subr.mxu0 0.0
    %152 = vmatpush1.xpose.msra.mxu0 0.0
    %153 = vmatprep.subr.mxu0 0.0
    %154 = vmatpush1.xpose.msra.mxu0 0.0
    %155 = vmatprep.subr.mxu0 0.0
    %156 = vmatpush1.xpose.msra.mxu0 0.0
    %157 = vmatprep.subr.mxu0 0.0
    %158 = vmatpush1.xpose.msra.mxu0 0.0
    %159 = vmatprep.subr.mxu0 0.0
    %160 = vmatpush1.xpose.msra.mxu0 0.0
    %161 = vmatprep.subr.mxu0 0.0
    %162 = vmatpush1.xpose.msra.mxu0 0.0
    %163 = vmatprep.subr.mxu0 0.0
    %164 = vmatpush1.xpose.msra.mxu0 0.0
    %165 = vmatprep.subr.mxu0 0.0
    %166 = vmatpush1.xpose.msra.mxu0 0.0
    %167 = vmatprep.subr.mxu0 0.0
    %168 = vmatpush1.xpose.msra.mxu0 0.0
    %169 = vmatprep.subr.mxu0 0.0
    %170 = vmatpush1.xpose.msra.mxu0 0.0
    %171 = vmatprep.subr.mxu0 0.0
    %172 = vmatpush1.xpose.msra.mxu0 0.0
    %173 = vmatprep.subr.mxu0 0.0
    %174 = vmatpush1.xpose.msra.mxu0 0.0
    %175 = vmatprep.subr.mxu0 0.0
    %176 = vmatpush1.xpose.msra.mxu0 0.0
    %177 = vmatprep.subr.mxu0 0.0
    %178 = vmatpush1.xpose.msra.mxu0 0.0
    %179 = vmatprep.subr.mxu0 0.0
    %180 = vmatpush1.xpose.msra.mxu0 0.0
    %181 = vmatprep.subr.mxu0 0.0
    %182 = vmatpush1.xpose.msra.mxu0 0.0
    %183 = vmatprep.subr.mxu0 0.0
    %184 = vmatpush1.xpose.msra.mxu0 0.0
    %185 = vmatprep.subr.mxu0 0.0
    %186 = vmatpush1.xpose.msra.mxu0 0.0
    %187 = vmatprep.subr.mxu0 0.0
    %188 = vmatpush1.xpose.msra.mxu0 0.0
    %189 = vmatprep.subr.mxu0 0.0
    %190 = vmatpush1.xpose.msra.mxu0 0.0
    %191 = vmatprep.subr.mxu0 0.0
    %192 = vmatpush1.xpose.msra.mxu0 0.0
    %193 = vmatprep.subr.mxu0 0.0
    %194 = vmatpush1.xpose.msra.mxu0 0.0
    %195 = vmatprep.subr.mxu0 0.0
    %196 = vmatpush1.xpose.msra.mxu0 0.0
    %197 = vmatprep.subr.mxu0 0.0
    %198 = vmatpush1.xpose.msra.mxu0 0.0
    %199 = vmatprep.subr.mxu0 0.0
    %200 = vmatpush1.xpose.msra.mxu0 0.0
    %201 = vmatprep.subr.mxu0 0.0
    %202 = vmatpush1.xpose.msra.mxu0 0.0
    %203 = vmatprep.subr.mxu0 0.0
    %204 = vmatpush1.xpose.msra.mxu0 0.0
    %205 = vmatprep.subr.mxu0 0.0
    %206 = vmatpush1.xpose.msra.mxu0 0.0
    %207 = vmatprep.subr.mxu0 0.0
    %208 = vmatpush1.xpose.msra.mxu0 0.0
    %209 = vmatprep.subr.mxu0 0.0
    %210 = vmatpush1.xpose.msra.mxu0 0.0
    %211 = vmatprep.mubr.f32.mxu0 %v40
    %212 = vmatmul.mubr.f32.gmra.mrb[0].mxu0 %v39
    %v213 = vpop.f32.mrb[0].mxu0
    %v214 = vadd.f32 %v138, %v213
    %v215 = vpop.f32.mrb[0].mxu0
    %216 = vdwg.mxu0
    %217 = vmatprep.subr.mxu0 %v89
    %218 = vmatpush1.xpose.msra.mxu0 %v88
    %219 = vmatprep.subr.mxu0 0.0
    %220 = vmatpush1.xpose.msra.mxu0 0.0
    %221 = vmatprep.subr.mxu0 0.0
    %222 = vmatpush1.xpose.msra.mxu0 0.0
    %223 = vmatprep.subr.mxu0 0.0
    %224 = vmatpush1.xpose.msra.mxu0 0.0
    %225 = vmatprep.subr.mxu0 0.0
    %226 = vmatpush1.xpose.msra.mxu0 0.0
    %227 = vmatprep.subr.mxu0 0.0
    %228 = vmatpush1.xpose.msra.mxu0 0.0
    %229 = vmatprep.subr.mxu0 0.0
    %230 = vmatpush1.xpose.msra.mxu0 0.0
    %231 = vmatprep.subr.mxu0 0.0
    %232 = vmatpush1.xpose.msra.mxu0 0.0
    %233 = vmatprep.subr.mxu0 0.0
    %234 = vmatpush1.xpose.msra.mxu0 0.0
    %235 = vmatprep.subr.mxu0 0.0
    %236 = vmatpush1.xpose.msra.mxu0 0.0
    %237 = vmatprep.subr.mxu0 0.0
    %238 = vmatpush1.xpose.msra.mxu0 0.0
    %239 = vmatprep.subr.mxu0 0.0
    %240 = vmatpush1.xpose.msra.mxu0 0.0
    %241 = vmatprep.subr.mxu0 0.0
    %242 = vmatpush1.xpose.msra.mxu0 0.0
    %243 = vmatprep.subr.mxu0 0.0
    %244 = vmatpush1.xpose.msra.mxu0 0.0
    %245 = vmatprep.subr.mxu0 0.0
    %246 = vmatpush1.xpose.msra.mxu0 0.0
    %247 = vmatprep.subr.mxu0 0.0
    %248 = vmatpush1.xpose.msra.mxu0 0.0
    %249 = vmatprep.subr.mxu0 0.0
    %250 = vmatpush1.xpose.msra.mxu0 0.0
    %251 = vmatprep.subr.mxu0 0.0
    %252 = vmatpush1.xpose.msra.mxu0 0.0
    %253 = vmatprep.subr.mxu0 0.0
    %254 = vmatpush1.xpose.msra.mxu0 0.0
    %255 = vmatprep.subr.mxu0 0.0
    %256 = vmatpush1.xpose.msra.mxu0 0.0
    %257 = vmatprep.subr.mxu0 0.0
    %258 = vmatpush1.xpose.msra.mxu0 0.0
    %259 = vmatprep.subr.mxu0 0.0
    %260 = vmatpush1.xpose.msra.mxu0 0.0
    %261 = vmatprep.subr.mxu0 0.0
    %262 = vmatpush1.xpose.msra.mxu0 0.0
    %263 = vmatprep.subr.mxu0 0.0
    %264 = vmatpush1.xpose.msra.mxu0 0.0
    %265 = vmatprep.subr.mxu0 0.0
    %266 = vmatpush1.xpose.msra.mxu0 0.0
    %267 = vmatprep.subr.mxu0 0.0
    %268 = vmatpush1.xpose.msra.mxu0 0.0
    %269 = vmatprep.subr.mxu0 0.0
    %270 = vmatpush1.xpose.msra.mxu0 0.0
    %271 = vmatprep.subr.mxu0 0.0
    %272 = vmatpush1.xpose.msra.mxu0 0.0
    %273 = vmatprep.subr.mxu0 0.0
    %274 = vmatpush1.xpose.msra.mxu0 0.0
    %275 = vmatprep.subr.mxu0 0.0
    %276 = vmatpush1.xpose.msra.mxu0 0.0
    %277 = vmatprep.subr.mxu0 0.0
    %278 = vmatpush1.xpose.msra.mxu0 0.0
    %279 = vmatprep.subr.mxu0 0.0
    %280 = vmatpush1.xpose.msra.mxu0 0.0
    %281 = vmatprep.mubr.f32.mxu0 %v42
    %282 = vmatmul.mubr.f32.gmra.mrb[0].mxu0 %v41
    %v283 = vpop.f32.mrb[0].mxu0
    %v284 = vadd.f32 %v214, %v283
    %v285 = vpop.f32.mrb[0].mxu0
    %286 = vdwg.mxu0
    %287 = vmatprep.subr.mxu0 %v91
    %288 = vmatpush1.xpose.msra.mxu0 %v90
    %289 = vmatprep.subr.mxu0 0.0
    %290 = vmatpush1.xpose.msra.mxu0 0.0
    %291 = vmatprep.subr.mxu0 0.0
    %292 = vmatpush1.xpose.msra.mxu0 0.0
    %293 = vmatprep.subr.mxu0 0.0
    %294 = vmatpush1.xpose.msra.mxu0 0.0
    %295 = vmatprep.subr.mxu0 0.0
    %296 = vmatpush1.xpose.msra.mxu0 0.0
    %297 = vmatprep.subr.mxu0 0.0
    %298 = vmatpush1.xpose.msra.mxu0 0.0
    %299 = vmatprep.subr.mxu0 0.0
    %300 = vmatpush1.xpose.msra.mxu0 0.0
    %301 = vmatprep.subr.mxu0 0.0
    %302 = vmatpush1.xpose.msra.mxu0 0.0
    %303 = vmatprep.subr.mxu0 0.0
    %304 = vmatpush1.xpose.msra.mxu0 0.0
    %305 = vmatprep.subr.mxu0 0.0
    %306 = vmatpush1.xpose.msra.mxu0 0.0
    %307 = vmatprep.subr.mxu0 0.0
    %308 = vmatpush1.xpose.msra.mxu0 0.0
    %309 = vmatprep.subr.mxu0 0.0
    %310 = vmatpush1.xpose.msra.mxu0 0.0
    %311 = vmatprep.subr.mxu0 0.0
    %312 = vmatpush1.xpose.msra.mxu0 0.0
    %313 = vmatprep.subr.mxu0 0.0
    %314 = vmatpush1.xpose.msra.mxu0 0.0
    %315 = vmatprep.subr.mxu0 0.0
    %316 = vmatpush1.xpose.msra.mxu0 0.0
    %317 = vmatprep.subr.mxu0 0.0
    %318 = vmatpush1.xpose.msra.mxu0 0.0
    %319 = vmatprep.subr.mxu0 0.0
    %320 = vmatpush1.xpose.msra.mxu0 0.0
    %321 = vmatprep.subr.mxu0 0.0
    %322 = vmatpush1.xpose.msra.mxu0 0.0
    %323 = vmatprep.subr.mxu0 0.0
    %324 = vmatpush1.xpose.msra.mxu0 0.0
    %325 = vmatprep.subr.mxu0 0.0
    %326 = vmatpush1.xpose.msra.mxu0 0.0
    %327 = vmatprep.subr.mxu0 0.0
    %328 = vmatpush1.xpose.msra.mxu0 0.0
    %329 = vmatprep.subr.mxu0 0.0
    %330 = vmatpush1.xpose.msra.mxu0 0.0
    %331 = vmatprep.subr.mxu0 0.0
    %332 = vmatpush1.xpose.msra.mxu0 0.0
    %333 = vmatprep.subr.mxu0 0.0
    %334 = vmatpush1.xpose.msra.mxu0 0.0
    %335 = vmatprep.subr.mxu0 0.0
    %336 = vmatpush1.xpose.msra.mxu0 0.0
    %337 = vmatprep.subr.mxu0 0.0
    %338 = vmatpush1.xpose.msra.mxu0 0.0
    %339 = vmatprep.subr.mxu0 0.0
    %340 = vmatpush1.xpose.msra.mxu0 0.0
    %341 = vmatprep.subr.mxu0 0.0
    %342 = vmatpush1.xpose.msra.mxu0 0.0
    %343 = vmatprep.subr.mxu0 0.0
    %344 = vmatpush1.xpose.msra.mxu0 0.0
    %345 = vmatprep.subr.mxu0 0.0
    %346 = vmatpush1.xpose.msra.mxu0 0.0
    %347 = vmatprep.subr.mxu0 0.0
    %348 = vmatpush1.xpose.msra.mxu0 0.0
    %349 = vmatprep.subr.mxu0 0.0
    %350 = vmatpush1.xpose.msra.mxu0 0.0
    %351 = vmatprep.mubr.f32.mxu0 %v44
    %352 = vmatmul.mubr.f32.gmra.mrb[0].mxu0 %v43
    %v353 = vpop.f32.mrb[0].mxu0
    %v354 = vadd.f32 %v284, %v353
    %v355 = vpop.f32.mrb[0].mxu0
    %356 = vdwg.mxu0
    %357 = vmatprep.subr.mxu0 %v93
    %358 = vmatpush1.xpose.msra.mxu0 %v92
    %359 = vmatprep.subr.mxu0 0.0
    %360 = vmatpush1.xpose.msra.mxu0 0.0
    %361 = vmatprep.subr.mxu0 0.0
    %362 = vmatpush1.xpose.msra.mxu0 0.0
    %363 = vmatprep.subr.mxu0 0.0
    %364 = vmatpush1.xpose.msra.mxu0 0.0
    %365 = vmatprep.subr.mxu0 0.0
    %366 = vmatpush1.xpose.msra.mxu0 0.0
    %367 = vmatprep.subr.mxu0 0.0
    %368 = vmatpush1.xpose.msra.mxu0 0.0
    %369 = vmatprep.subr.mxu0 0.0
    %370 = vmatpush1.xpose.msra.mxu0 0.0
    %371 = vmatprep.subr.mxu0 0.0
    %372 = vmatpush1.xpose.msra.mxu0 0.0
    %373 = vmatprep.subr.mxu0 0.0
    %374 = vmatpush1.xpose.msra.mxu0 0.0
    %375 = vmatprep.subr.mxu0 0.0
    %376 = vmatpush1.xpose.msra.mxu0 0.0
    %377 = vmatprep.subr.mxu0 0.0
    %378 = vmatpush1.xpose.msra.mxu0 0.0
    %379 = vmatprep.subr.mxu0 0.0
    %380 = vmatpush1.xpose.msra.mxu0 0.0
    %381 = vmatprep.subr.mxu0 0.0
    %382 = vmatpush1.xpose.msra.mxu0 0.0
    %383 = vmatprep.subr.mxu0 0.0
    %384 = vmatpush1.xpose.msra.mxu0 0.0
    %385 = vmatprep.subr.mxu0 0.0
    %386 = vmatpush1.xpose.msra.mxu0 0.0
    %387 = vmatprep.subr.mxu0 0.0
    %388 = vmatpush1.xpose.msra.mxu0 0.0
    %389 = vmatprep.subr.mxu0 0.0
    %390 = vmatpush1.xpose.msra.mxu0 0.0
    %391 = vmatprep.subr.mxu0 0.0
    %392 = vmatpush1.xpose.msra.mxu0 0.0
    %393 = vmatprep.subr.mxu0 0.0
    %394 = vmatpush1.xpose.msra.mxu0 0.0
    %395 = vmatprep.subr.mxu0 0.0
    %396 = vmatpush1.xpose.msra.mxu0 0.0
    %397 = vmatprep.subr.mxu0 0.0
    %398 = vmatpush1.xpose.msra.mxu0 0.0
    %399 = vmatprep.subr.mxu0 0.0
    %400 = vmatpush1.xpose.msra.mxu0 0.0
    %401 = vmatprep.subr.mxu0 0.0
    %402 = vmatpush1.xpose.msra.mxu0 0.0
    %403 = vmatprep.subr.mxu0 0.0
    %404 = vmatpush1.xpose.msra.mxu0 0.0
    %405 = vmatprep.subr.mxu0 0.0
    %406 = vmatpush1.xpose.msra.mxu0 0.0
    %407 = vmatprep.subr.mxu0 0.0
    %408 = vmatpush1.xpose.msra.mxu0 0.0
    %409 = vmatprep.subr.mxu0 0.0
    %410 = vmatpush1.xpose.msra.mxu0 0.0
    %411 = vmatprep.subr.mxu0 0.0
    %412 = vmatpush1.xpose.msra.mxu0 0.0
    %413 = vmatprep.subr.mxu0 0.0
    %414 = vmatpush1.xpose.msra.mxu0 0.0
    %415 = vmatprep.subr.mxu0 0.0
    %416 = vmatpush1.xpose.msra.mxu0 0.0
    %417 = vmatprep.subr.mxu0 0.0
    %418 = vmatpush1.xpose.msra.mxu0 0.0
    %419 = vmatprep.subr.mxu0 0.0
    %420 = vmatpush1.xpose.msra.mxu0 0.0
    %421 = vmatprep.mubr.f32.mxu0 %v46
    %422 = vmatmul.mubr.f32.gmra.mrb[0].mxu0 %v45
    %v423 = vpop.f32.mrb[0].mxu0
    %v424 = vadd.f32 %v354, %v423
    %v425 = vpop.f32.mrb[0].mxu0
    %426 = vdwg.mxu0
    %427 = vmatprep.subr.mxu0 %v95
    %428 = vmatpush1.xpose.msra.mxu0 %v94
    %429 = vmatprep.subr.mxu0 0.0
    %430 = vmatpush1.xpose.msra.mxu0 0.0
    %431 = vmatprep.subr.mxu0 0.0
    %432 = vmatpush1.xpose.msra.mxu0 0.0
    %433 = vmatprep.subr.mxu0 0.0
    %434 = vmatpush1.xpose.msra.mxu0 0.0
    %435 = vmatprep.subr.mxu0 0.0
    %436 = vmatpush1.xpose.msra.mxu0 0.0
    %437 = vmatprep.subr.mxu0 0.0
    %438 = vmatpush1.xpose.msra.mxu0 0.0
    %439 = vmatprep.subr.mxu0 0.0
    %440 = vmatpush1.xpose.msra.mxu0 0.0
    %441 = vmatprep.subr.mxu0 0.0
    %442 = vmatpush1.xpose.msra.mxu0 0.0
    %443 = vmatprep.subr.mxu0 0.0
    %444 = vmatpush1.xpose.msra.mxu0 0.0
    %445 = vmatprep.subr.mxu0 0.0
    %446 = vmatpush1.xpose.msra.mxu0 0.0
    %447 = vmatprep.subr.mxu0 0.0
    %448 = vmatpush1.xpose.msra.mxu0 0.0
    %449 = vmatprep.subr.mxu0 0.0
    %450 = vmatpush1.xpose.msra.mxu0 0.0
    %451 = vmatprep.subr.mxu0 0.0
    %452 = vmatpush1.xpose.msra.mxu0 0.0
    %453 = vmatprep.subr.mxu0 0.0
    %454 = vmatpush1.xpose.msra.mxu0 0.0
    %455 = vmatprep.subr.mxu0 0.0
    %456 = vmatpush1.xpose.msra.mxu0 0.0
    %457 = vmatprep.subr.mxu0 0.0
    %458 = vmatpush1.xpose.msra.mxu0 0.0
    %459 = vmatprep.subr.mxu0 0.0
    %460 = vmatpush1.xpose.msra.mxu0 0.0
    %461 = vmatprep.subr.mxu0 0.0
    %462 = vmatpush1.xpose.msra.mxu0 0.0
    %463 = vmatprep.subr.mxu0 0.0
    %464 = vmatpush1.xpose.msra.mxu0 0.0
    %465 = vmatprep.subr.mxu0 0.0
    %466 = vmatpush1.xpose.msra.mxu0 0.0
    %467 = vmatprep.subr.mxu0 0.0
    %468 = vmatpush1.xpose.msra.mxu0 0.0
    %469 = vmatprep.subr.mxu0 0.0
    %470 = vmatpush1.xpose.msra.mxu0 0.0
    %471 = vmatprep.subr.mxu0 0.0
    %472 = vmatpush1.xpose.msra.mxu0 0.0
    %473 = vmatprep.subr.mxu0 0.0
    %474 = vmatpush1.xpose.msra.mxu0 0.0
    %475 = vmatprep.subr.mxu0 0.0
    %476 = vmatpush1.xpose.msra.mxu0 0.0
    %477 = vmatprep.subr.mxu0 0.0
    %478 = vmatpush1.xpose.msra.mxu0 0.0
    %479 = vmatprep.subr.mxu0 0.0
    %480 = vmatpush1.xpose.msra.mxu0 0.0
    %481 = vmatprep.subr.mxu0 0.0
    %482 = vmatpush1.xpose.msra.mxu0 0.0
    %483 = vmatprep.subr.mxu0 0.0
    %484 = vmatpush1.xpose.msra.mxu0 0.0
    %485 = vmatprep.subr.mxu0 0.0
    %486 = vmatpush1.xpose.msra.mxu0 0.0
    %487 = vmatprep.subr.mxu0 0.0
    %488 = vmatpush1.xpose.msra.mxu0 0.0
    %489 = vmatprep.subr.mxu0 0.0
    %490 = vmatpush1.xpose.msra.mxu0 0.0
    %491 = vmatprep.mubr.f32.mxu0 %v48
    %492 = vmatmul.mubr.f32.gmra.mrb[0].mxu0 %v47
    %v493 = vpop.f32.mrb[0].mxu0
    %v494 = vadd.f32 %v424, %v493
    %v495 = vpop.f32.mrb[0].mxu0
    %496 = vdwg.mxu0
    %497 = vmatprep.subr.mxu0 %v97
    %498 = vmatpush1.xpose.msra.mxu0 %v96
    %499 = vmatprep.subr.mxu0 0.0
    %500 = vmatpush1.xpose.msra.mxu0 0.0
    %501 = vmatprep.subr.mxu0 0.0
    %502 = vmatpush1.xpose.msra.mxu0 0.0
    %503 = vmatprep.subr.mxu0 0.0
    %504 = vmatpush1.xpose.msra.mxu0 0.0
    %505 = vmatprep.subr.mxu0 0.0
    %506 = vmatpush1.xpose.msra.mxu0 0.0
    %507 = vmatprep.subr.mxu0 0.0
    %508 = vmatpush1.xpose.msra.mxu0 0.0
    %509 = vmatprep.subr.mxu0 0.0
    %510 = vmatpush1.xpose.msra.mxu0 0.0
    %511 = vmatprep.subr.mxu0 0.0
    %512 = vmatpush1.xpose.msra.mxu0 0.0
    %513 = vmatprep.subr.mxu0 0.0
    %514 = vmatpush1.xpose.msra.mxu0 0.0
    %515 = vmatprep.subr.mxu0 0.0
    %516 = vmatpush1.xpose.msra.mxu0 0.0
    %517 = vmatprep.subr.mxu0 0.0
    %518 = vmatpush1.xpose.msra.mxu0 0.0
    %519 = vmatprep.subr.mxu0 0.0
    %520 = vmatpush1.xpose.msra.mxu0 0.0
    %521 = vmatprep.subr.mxu0 0.0
    %522 = vmatpush1.xpose.msra.mxu0 0.0
    %523 = vmatprep.subr.mxu0 0.0
    %524 = vmatpush1.xpose.msra.mxu0 0.0
    %525 = vmatprep.subr.mxu0 0.0
    %526 = vmatpush1.xpose.msra.mxu0 0.0
    %527 = vmatprep.subr.mxu0 0.0
    %528 = vmatpush1.xpose.msra.mxu0 0.0
    %529 = vmatprep.subr.mxu0 0.0
    %530 = vmatpush1.xpose.msra.mxu0 0.0
    %531 = vmatprep.subr.mxu0 0.0
    %532 = vmatpush1.xpose.msra.mxu0 0.0
    %533 = vmatprep.subr.mxu0 0.0
    %534 = vmatpush1.xpose.msra.mxu0 0.0
    %535 = vmatprep.subr.mxu0 0.0
    %536 = vmatpush1.xpose.msra.mxu0 0.0
    %537 = vmatprep.subr.mxu0 0.0
    %538 = vmatpush1.xpose.msra.mxu0 0.0
    %539 = vmatprep.subr.mxu0 0.0
    %540 = vmatpush1.xpose.msra.mxu0 0.0
    %541 = vmatprep.subr.mxu0 0.0
    %542 = vmatpush1.xpose.msra.mxu0 0.0
    %543 = vmatprep.subr.mxu0 0.0
    %544 = vmatpush1.xpose.msra.mxu0 0.0
    %545 = vmatprep.subr.mxu0 0.0
    %546 = vmatpush1.xpose.msra.mxu0 0.0
    %547 = vmatprep.subr.mxu0 0.0
    %548 = vmatpush1.xpose.msra.mxu0 0.0
    %549 = vmatprep.subr.mxu0 0.0
    %550 = vmatpush1.xpose.msra.mxu0 0.0
    %551 = vmatprep.subr.mxu0 0.0
    %552 = vmatpush1.xpose.msra.mxu0 0.0
    %553 = vmatprep.subr.mxu0 0.0
    %554 = vmatpush1.xpose.msra.mxu0 0.0
    %555 = vmatprep.subr.mxu0 0.0
    %556 = vmatpush1.xpose.msra.mxu0 0.0
    %557 = vmatprep.subr.mxu0 0.0
    %558 = vmatpush1.xpose.msra.mxu0 0.0
    %559 = vmatprep.subr.mxu0 0.0
    %560 = vmatpush1.xpose.msra.mxu0 0.0
    %561 = vmatprep.mubr.f32.mxu0 %v50
    %562 = vmatmul.mubr.f32.gmra.mrb[0].mxu0 %v49
    %v563 = vpop.f32.mrb[0].mxu0
    %v564 = vadd.f32 %v494, %v563
    %v565 = vpop.f32.mrb[0].mxu0
    %566 = vdwg.mxu0
    %567 = vmatprep.subr.mxu0 %v99
    %568 = vmatpush1.xpose.msra.mxu0 %v98
    %569 = vmatprep.subr.mxu0 0.0
    %570 = vmatpush1.xpose.msra.mxu0 0.0
    %571 = vmatprep.subr.mxu0 0.0
    %572 = vmatpush1.xpose.msra.mxu0 0.0
    %573 = vmatprep.subr.mxu0 0.0
    %574 = vmatpush1.xpose.msra.mxu0 0.0
    %575 = vmatprep.subr.mxu0 0.0
    %576 = vmatpush1.xpose.msra.mxu0 0.0
    %577 = vmatprep.subr.mxu0 0.0
    %578 = vmatpush1.xpose.msra.mxu0 0.0
    %579 = vmatprep.subr.mxu0 0.0
    %580 = vmatpush1.xpose.msra.mxu0 0.0
    %581 = vmatprep.subr.mxu0 0.0
    %582 = vmatpush1.xpose.msra.mxu0 0.0
    %583 = vmatprep.subr.mxu0 0.0
    %584 = vmatpush1.xpose.msra.mxu0 0.0
    %585 = vmatprep.subr.mxu0 0.0
    %586 = vmatpush1.xpose.msra.mxu0 0.0
    %587 = vmatprep.subr.mxu0 0.0
    %588 = vmatpush1.xpose.msra.mxu0 0.0
    %589 = vmatprep.subr.mxu0 0.0
    %590 = vmatpush1.xpose.msra.mxu0 0.0
    %591 = vmatprep.subr.mxu0 0.0
    %592 = vmatpush1.xpose.msra.mxu0 0.0
    %593 = vmatprep.subr.mxu0 0.0
    %594 = vmatpush1.xpose.msra.mxu0 0.0
    %595 = vmatprep.subr.mxu0 0.0
    %596 = vmatpush1.xpose.msra.mxu0 0.0
    %597 = vmatprep.subr.mxu0 0.0
    %598 = vmatpush1.xpose.msra.mxu0 0.0
    %599 = vmatprep.subr.mxu0 0.0
    %600 = vmatpush1.xpose.msra.mxu0 0.0
    %601 = vmatprep.subr.mxu0 0.0
    %602 = vmatpush1.xpose.msra.mxu0 0.0
    %603 = vmatprep.subr.mxu0 0.0
    %604 = vmatpush1.xpose.msra.mxu0 0.0
    %605 = vmatprep.subr.mxu0 0.0
    %606 = vmatpush1.xpose.msra.mxu0 0.0
    %607 = vmatprep.subr.mxu0 0.0
    %608 = vmatpush1.xpose.msra.mxu0 0.0
    %609 = vmatprep.subr.mxu0 0.0
    %610 = vmatpush1.xpose.msra.mxu0 0.0
    %611 = vmatprep.subr.mxu0 0.0
    %612 = vmatpush1.xpose.msra.mxu0 0.0
    %613 = vmatprep.subr.mxu0 0.0
    %614 = vmatpush1.xpose.msra.mxu0 0.0
    %615 = vmatprep.subr.mxu0 0.0
    %616 = vmatpush1.xpose.msra.mxu0 0.0
    %617 = vmatprep.subr.mxu0 0.0
    %618 = vmatpush1.xpose.msra.mxu0 0.0
    %619 = vmatprep.subr.mxu0 0.0
    %620 = vmatpush1.xpose.msra.mxu0 0.0
    %621 = vmatprep.subr.mxu0 0.0
    %622 = vmatpush1.xpose.msra.mxu0 0.0
    %623 = vmatprep.subr.mxu0 0.0
    %624 = vmatpush1.xpose.msra.mxu0 0.0
    %625 = vmatprep.subr.mxu0 0.0
    %626 = vmatpush1.xpose.msra.mxu0 0.0
    %627 = vmatprep.subr.mxu0 0.0
    %628 = vmatpush1.xpose.msra.mxu0 0.0
    %629 = vmatprep.subr.mxu0 0.0
    %630 = vmatpush1.xpose.msra.mxu0 0.0
    %631 = vmatprep.mubr.f32.mxu0 %v52
    %632 = vmatmul.mubr.f32.gmra.mrb[0].mxu0 %v51
    %v633 = vpop.f32.mrb[0].mxu0
    %v634 = vadd.f32 %v564, %v633
    %v635 = vpop.f32.mrb[0].mxu0
    %636 = vdwg.mxu0
    %637 = vmatprep.subr.mxu0 %v101
    %638 = vmatpush1.xpose.msra.mxu0 %v100
    %639 = vmatprep.subr.mxu0 0.0
    %640 = vmatpush1.xpose.msra.mxu0 0.0
    %641 = vmatprep.subr.mxu0 0.0
    %642 = vmatpush1.xpose.msra.mxu0 0.0
    %643 = vmatprep.subr.mxu0 0.0
    %644 = vmatpush1.xpose.msra.mxu0 0.0
    %645 = vmatprep.subr.mxu0 0.0
    %646 = vmatpush1.xpose.msra.mxu0 0.0
    %647 = vmatprep.subr.mxu0 0.0
    %648 = vmatpush1.xpose.msra.mxu0 0.0
    %649 = vmatprep.subr.mxu0 0.0
    %650 = vmatpush1.xpose.msra.mxu0 0.0
    %651 = vmatprep.subr.mxu0 0.0
    %652 = vmatpush1.xpose.msra.mxu0 0.0
    %653 = vmatprep.subr.mxu0 0.0
    %654 = vmatpush1.xpose.msra.mxu0 0.0
    %655 = vmatprep.subr.mxu0 0.0
    %656 = vmatpush1.xpose.msra.mxu0 0.0
    %657 = vmatprep.subr.mxu0 0.0
    %658 = vmatpush1.xpose.msra.mxu0 0.0
    %659 = vmatprep.subr.mxu0 0.0
    %660 = vmatpush1.xpose.msra.mxu0 0.0
    %661 = vmatprep.subr.mxu0 0.0
    %662 = vmatpush1.xpose.msra.mxu0 0.0
    %663 = vmatprep.subr.mxu0 0.0
    %664 = vmatpush1.xpose.msra.mxu0 0.0
    %665 = vmatprep.subr.mxu0 0.0
    %666 = vmatpush1.xpose.msra.mxu0 0.0
    %667 = vmatprep.subr.mxu0 0.0
    %668 = vmatpush1.xpose.msra.mxu0 0.0
    %669 = vmatprep.subr.mxu0 0.0
    %670 = vmatpush1.xpose.msra.mxu0 0.0
    %671 = vmatprep.subr.mxu0 0.0
    %672 = vmatpush1.xpose.msra.mxu0 0.0
    %673 = vmatprep.subr.mxu0 0.0
    %674 = vmatpush1.xpose.msra.mxu0 0.0
    %675 = vmatprep.subr.mxu0 0.0
    %676 = vmatpush1.xpose.msra.mxu0 0.0
    %677 = vmatprep.subr.mxu0 0.0
    %678 = vmatpush1.xpose.msra.mxu0 0.0
    %679 = vmatprep.subr.mxu0 0.0
    %680 = vmatpush1.xpose.msra.mxu0 0.0
    %681 = vmatprep.subr.mxu0 0.0
    %682 = vmatpush1.xpose.msra.mxu0 0.0
    %683 = vmatprep.subr.mxu0 0.0
    %684 = vmatpush1.xpose.msra.mxu0 0.0
    %685 = vmatprep.subr.mxu0 0.0
    %686 = vmatpush1.xpose.msra.mxu0 0.0
    %687 = vmatprep.subr.mxu0 0.0
    %688 = vmatpush1.xpose.msra.mxu0 0.0
    %689 = vmatprep.subr.mxu0 0.0
    %690 = vmatpush1.xpose.msra.mxu0 0.0
    %691 = vmatprep.subr.mxu0 0.0
    %692 = vmatpush1.xpose.msra.mxu0 0.0
    %693 = vmatprep.subr.mxu0 0.0
    %694 = vmatpush1.xpose.msra.mxu0 0.0
    %695 = vmatprep.subr.mxu0 0.0
    %696 = vmatpush1.xpose.msra.mxu0 0.0
    %697 = vmatprep.subr.mxu0 0.0
    %698 = vmatpush1.xpose.msra.mxu0 0.0
    %699 = vmatprep.subr.mxu0 0.0
    %700 = vmatpush1.xpose.msra.mxu0 0.0
    %701 = vmatprep.mubr.f32.mxu0 %v54
    %702 = vmatmul.mubr.f32.gmra.mrb[0].mxu0 %v53
    %v703 = vpop.f32.mrb[0].mxu0
    %v704 = vadd.f32 %v634, %v703
    %v705 = vpop.f32.mrb[0].mxu0
    %706 = vdwg.mxu0
    %707 = vmatprep.subr.mxu0 %v103
    %708 = vmatpush1.xpose.msra.mxu0 %v102
    %709 = vmatprep.subr.mxu0 0.0
    %710 = vmatpush1.xpose.msra.mxu0 0.0
    %711 = vmatprep.subr.mxu0 0.0
    %712 = vmatpush1.xpose.msra.mxu0 0.0
    %713 = vmatprep.subr.mxu0 0.0
    %714 = vmatpush1.xpose.msra.mxu0 0.0
    %715 = vmatprep.subr.mxu0 0.0
    %716 = vmatpush1.xpose.msra.mxu0 0.0
    %717 = vmatprep.subr.mxu0 0.0
    %718 = vmatpush1.xpose.msra.mxu0 0.0
    %719 = vmatprep.subr.mxu0 0.0
    %720 = vmatpush1.xpose.msra.mxu0 0.0
    %721 = vmatprep.subr.mxu0 0.0
    %722 = vmatpush1.xpose.msra.mxu0 0.0
    %723 = vmatprep.subr.mxu0 0.0
    %724 = vmatpush1.xpose.msra.mxu0 0.0
    %725 = vmatprep.subr.mxu0 0.0
    %726 = vmatpush1.xpose.msra.mxu0 0.0
    %727 = vmatprep.subr.mxu0 0.0
    %728 = vmatpush1.xpose.msra.mxu0 0.0
    %729 = vmatprep.subr.mxu0 0.0
    %730 = vmatpush1.xpose.msra.mxu0 0.0
    %731 = vmatprep.subr.mxu0 0.0
    %732 = vmatpush1.xpose.msra.mxu0 0.0
    %733 = vmatprep.subr.mxu0 0.0
    %734 = vmatpush1.xpose.msra.mxu0 0.0
    %735 = vmatprep.subr.mxu0 0.0
    %736 = vmatpush1.xpose.msra.mxu0 0.0
    %737 = vmatprep.subr.mxu0 0.0
    %738 = vmatpush1.xpose.msra.mxu0 0.0
    %739 = vmatprep.subr.mxu0 0.0
    %740 = vmatpush1.xpose.msra.mxu0 0.0
    %741 = vmatprep.subr.mxu0 0.0
    %742 = vmatpush1.xpose.msra.mxu0 0.0
    %743 = vmatprep.subr.mxu0 0.0
    %744 = vmatpush1.xpose.msra.mxu0 0.0
    %745 = vmatprep.subr.mxu0 0.0
    %746 = vmatpush1.xpose.msra.mxu0 0.0
    %747 = vmatprep.subr.mxu0 0.0
    %748 = vmatpush1.xpose.msra.mxu0 0.0
    %749 = vmatprep.subr.mxu0 0.0
    %750 = vmatpush1.xpose.msra.mxu0 0.0
    %751 = vmatprep.subr.mxu0 0.0
    %752 = vmatpush1.xpose.msra.mxu0 0.0
    %753 = vmatprep.subr.mxu0 0.0
    %754 = vmatpush1.xpose.msra.mxu0 0.0
    %755 = vmatprep.subr.mxu0 0.0
    %756 = vmatpush1.xpose.msra.mxu0 0.0
    %757 = vmatprep.subr.mxu0 0.0
    %758 = vmatpush1.xpose.msra.mxu0 0.0
    %759 = vmatprep.subr.mxu0 0.0
    %760 = vmatpush1.xpose.msra.mxu0 0.0
    %761 = vmatprep.subr.mxu0 0.0
    %762 = vmatpush1.xpose.msra.mxu0 0.0
    %763 = vmatprep.subr.mxu0 0.0
    %764 = vmatpush1.xpose.msra.mxu0 0.0
    %765 = vmatprep.subr.mxu0 0.0
    %766 = vmatpush1.xpose.msra.mxu0 0.0
    %767 = vmatprep.subr.mxu0 0.0
    %768 = vmatpush1.xpose.msra.mxu0 0.0
    %769 = vmatprep.subr.mxu0 0.0
    %770 = vmatpush1.xpose.msra.mxu0 0.0
    %771 = vmatprep.mubr.f32.mxu0 %v56
    %772 = vmatmul.mubr.f32.gmra.mrb[0].mxu0 %v55
    %v773 = vpop.f32.mrb[0].mxu0
    %v774 = vadd.f32 %v704, %v773
    %v775 = vpop.f32.mrb[0].mxu0
    %776 = vdwg.mxu0
    %777 = vmatprep.subr.mxu0 %v105
    %778 = vmatpush1.xpose.msra.mxu0 %v104
    %779 = vmatprep.subr.mxu0 0.0
    %780 = vmatpush1.xpose.msra.mxu0 0.0
    %781 = vmatprep.subr.mxu0 0.0
    %782 = vmatpush1.xpose.msra.mxu0 0.0
    %783 = vmatprep.subr.mxu0 0.0
    %784 = vmatpush1.xpose.msra.mxu0 0.0
    %785 = vmatprep.subr.mxu0 0.0
    %786 = vmatpush1.xpose.msra.mxu0 0.0
    %787 = vmatprep.subr.mxu0 0.0
    %788 = vmatpush1.xpose.msra.mxu0 0.0
    %789 = vmatprep.subr.mxu0 0.0
    %790 = vmatpush1.xpose.msra.mxu0 0.0
    %791 = vmatprep.subr.mxu0 0.0
    %792 = vmatpush1.xpose.msra.mxu0 0.0
    %793 = vmatprep.subr.mxu0 0.0
    %794 = vmatpush1.xpose.msra.mxu0 0.0
    %795 = vmatprep.subr.mxu0 0.0
    %796 = vmatpush1.xpose.msra.mxu0 0.0
    %797 = vmatprep.subr.mxu0 0.0
    %798 = vmatpush1.xpose.msra.mxu0 0.0
    %799 = vmatprep.subr.mxu0 0.0
    %800 = vmatpush1.xpose.msra.mxu0 0.0
    %801 = vmatprep.subr.mxu0 0.0
    %802 = vmatpush1.xpose.msra.mxu0 0.0
    %803 = vmatprep.subr.mxu0 0.0
    %804 = vmatpush1.xpose.msra.mxu0 0.0
    %805 = vmatprep.subr.mxu0 0.0
    %806 = vmatpush1.xpose.msra.mxu0 0.0
    %807 = vmatprep.subr.mxu0 0.0
    %808 = vmatpush1.xpose.msra.mxu0 0.0
    %809 = vmatprep.subr.mxu0 0.0
    %810 = vmatpush1.xpose.msra.mxu0 0.0
    %811 = vmatprep.subr.mxu0 0.0
    %812 = vmatpush1.xpose.msra.mxu0 0.0
    %813 = vmatprep.subr.mxu0 0.0
    %814 = vmatpush1.xpose.msra.mxu0 0.0
    %815 = vmatprep.subr.mxu0 0.0
    %816 = vmatpush1.xpose.msra.mxu0 0.0
    %817 = vmatprep.subr.mxu0 0.0
    %818 = vmatpush1.xpose.msra.mxu0 0.0
    %819 = vmatprep.subr.mxu0 0.0
    %820 = vmatpush1.xpose.msra.mxu0 0.0
    %821 = vmatprep.subr.mxu0 0.0
    %822 = vmatpush1.xpose.msra.mxu0 0.0
    %823 = vmatprep.subr.mxu0 0.0
    %824 = vmatpush1.xpose.msra.mxu0 0.0
    %825 = vmatprep.subr.mxu0 0.0
    %826 = vmatpush1.xpose.msra.mxu0 0.0
    %827 = vmatprep.subr.mxu0 0.0
    %828 = vmatpush1.xpose.msra.mxu0 0.0
    %829 = vmatprep.subr.mxu0 0.0
    %830 = vmatpush1.xpose.msra.mxu0 0.0
    %831 = vmatprep.subr.mxu0 0.0
    %832 = vmatpush1.xpose.msra.mxu0 0.0
    %833 = vmatprep.subr.mxu0 0.0
    %834 = vmatpush1.xpose.msra.mxu0 0.0
    %835 = vmatprep.subr.mxu0 0.0
    %836 = vmatpush1.xpose.msra.mxu0 0.0
    %837 = vmatprep.subr.mxu0 0.0
    %838 = vmatpush1.xpose.msra.mxu0 0.0
    %839 = vmatprep.subr.mxu0 0.0
    %840 = vmatpush1.xpose.msra.mxu0 0.0
    %841 = vmatprep.mubr.f32.mxu0 %v58
    %842 = vmatmul.mubr.f32.gmra.mrb[0].mxu0 %v57
    %v843 = vpop.f32.mrb[0].mxu0
    %v844 = vadd.f32 %v774, %v843
    %v845 = vpop.f32.mrb[0].mxu0
    %846 = vdwg.mxu0
    %847 = vmatprep.subr.mxu0 %v107
    %848 = vmatpush1.xpose.msra.mxu0 %v106
    %849 = vmatprep.subr.mxu0 0.0
    %850 = vmatpush1.xpose.msra.mxu0 0.0
    %851 = vmatprep.subr.mxu0 0.0
    %852 = vmatpush1.xpose.msra.mxu0 0.0
    %853 = vmatprep.subr.mxu0 0.0
    %854 = vmatpush1.xpose.msra.mxu0 0.0
    %855 = vmatprep.subr.mxu0 0.0
    %856 = vmatpush1.xpose.msra.mxu0 0.0
    %857 = vmatprep.subr.mxu0 0.0
    %858 = vmatpush1.xpose.msra.mxu0 0.0
    %859 = vmatprep.subr.mxu0 0.0
    %860 = vmatpush1.xpose.msra.mxu0 0.0
    %861 = vmatprep.subr.mxu0 0.0
    %862 = vmatpush1.xpose.msra.mxu0 0.0
    %863 = vmatprep.subr.mxu0 0.0
    %864 = vmatpush1.xpose.msra.mxu0 0.0
    %865 = vmatprep.subr.mxu0 0.0
    %866 = vmatpush1.xpose.msra.mxu0 0.0
    %867 = vmatprep.subr.mxu0 0.0
    %868 = vmatpush1.xpose.msra.mxu0 0.0
    %869 = vmatprep.subr.mxu0 0.0
    %870 = vmatpush1.xpose.msra.mxu0 0.0
    %871 = vmatprep.subr.mxu0 0.0
    %872 = vmatpush1.xpose.msra.mxu0 0.0
    %873 = vmatprep.subr.mxu0 0.0
    %874 = vmatpush1.xpose.msra.mxu0 0.0
    %875 = vmatprep.subr.mxu0 0.0
    %876 = vmatpush1.xpose.msra.mxu0 0.0
    %877 = vmatprep.subr.mxu0 0.0
    %878 = vmatpush1.xpose.msra.mxu0 0.0
    %879 = vmatprep.subr.mxu0 0.0
    %880 = vmatpush1.xpose.msra.mxu0 0.0
    %881 = vmatprep.subr.mxu0 0.0
    %882 = vmatpush1.xpose.msra.mxu0 0.0
    %883 = vmatprep.subr.mxu0 0.0
    %884 = vmatpush1.xpose.msra.mxu0 0.0
    %885 = vmatprep.subr.mxu0 0.0
    %886 = vmatpush1.xpose.msra.mxu0 0.0
    %887 = vmatprep.subr.mxu0 0.0
    %888 = vmatpush1.xpose.msra.mxu0 0.0
    %889 = vmatprep.subr.mxu0 0.0
    %890 = vmatpush1.xpose.msra.mxu0 0.0
    %891 = vmatprep.subr.mxu0 0.0
    %892 = vmatpush1.xpose.msra.mxu0 0.0
    %893 = vmatprep.subr.mxu0 0.0
    %894 = vmatpush1.xpose.msra.mxu0 0.0
    %895 = vmatprep.subr.mxu0 0.0
    %896 = vmatpush1.xpose.msra.mxu0 0.0
    %897 = vmatprep.subr.mxu0 0.0
    %898 = vmatpush1.xpose.msra.mxu0 0.0
    %899 = vmatprep.subr.mxu0 0.0
    %900 = vmatpush1.xpose.msra.mxu0 0.0
    %901 = vmatprep.subr.mxu0 0.0
    %902 = vmatpush1.xpose.msra.mxu0 0.0
    %903 = vmatprep.subr.mxu0 0.0
    %904 = vmatpush1.xpose.msra.mxu0 0.0
    %905 = vmatprep.subr.mxu0 0.0
    %906 = vmatpush1.xpose.msra.mxu0 0.0
    %907 = vmatprep.subr.mxu0 0.0
    %908 = vmatpush1.xpose.msra.mxu0 0.0
    %909 = vmatprep.subr.mxu0 0.0
    %910 = vmatpush1.xpose.msra.mxu0 0.0
    %911 = vmatprep.mubr.f32.mxu0 %v60
    %912 = vmatmul.mubr.f32.gmra.mrb[0].mxu0 %v59
    %v913 = vpop.f32.mrb[0].mxu0
    %v914 = vadd.f32 %v844, %v913
    %v915 = vpop.f32.mrb[0].mxu0
    %916 = vdwg.mxu0
    %917 = vmatprep.subr.mxu0 %v109
    %918 = vmatpush1.xpose.msra.mxu0 %v108
    %919 = vmatprep.subr.mxu0 0.0
    %920 = vmatpush1.xpose.msra.mxu0 0.0
    %921 = vmatprep.subr.mxu0 0.0
    %922 = vmatpush1.xpose.msra.mxu0 0.0
    %923 = vmatprep.subr.mxu0 0.0
    %924 = vmatpush1.xpose.msra.mxu0 0.0
    %925 = vmatprep.subr.mxu0 0.0
    %926 = vmatpush1.xpose.msra.mxu0 0.0
    %927 = vmatprep.subr.mxu0 0.0
    %928 = vmatpush1.xpose.msra.mxu0 0.0
    %929 = vmatprep.subr.mxu0 0.0
    %930 = vmatpush1.xpose.msra.mxu0 0.0
    %931 = vmatprep.subr.mxu0 0.0
    %932 = vmatpush1.xpose.msra.mxu0 0.0
    %933 = vmatprep.subr.mxu0 0.0
    %934 = vmatpush1.xpose.msra.mxu0 0.0
    %935 = vmatprep.subr.mxu0 0.0
    %936 = vmatpush1.xpose.msra.mxu0 0.0
    %937 = vmatprep.subr.mxu0 0.0
    %938 = vmatpush1.xpose.msra.mxu0 0.0
    %939 = vmatprep.subr.mxu0 0.0
    %940 = vmatpush1.xpose.msra.mxu0 0.0
    %941 = vmatprep.subr.mxu0 0.0
    %942 = vmatpush1.xpose.msra.mxu0 0.0
    %943 = vmatprep.subr.mxu0 0.0
    %944 = vmatpush1.xpose.msra.mxu0 0.0
    %945 = vmatprep.subr.mxu0 0.0
    %946 = vmatpush1.xpose.msra.mxu0 0.0
    %947 = vmatprep.subr.mxu0 0.0
    %948 = vmatpush1.xpose.msra.mxu0 0.0
    %949 = vmatprep.subr.mxu0 0.0
    %950 = vmatpush1.xpose.msra.mxu0 0.0
    %951 = vmatprep.subr.mxu0 0.0
    %952 = vmatpush1.xpose.msra.mxu0 0.0
    %953 = vmatprep.subr.mxu0 0.0
    %954 = vmatpush1.xpose.msra.mxu0 0.0
    %955 = vmatprep.subr.mxu0 0.0
    %956 = vmatpush1.xpose.msra.mxu0 0.0
    %957 = vmatprep.subr.mxu0 0.0
    %958 = vmatpush1.xpose.msra.mxu0 0.0
    %959 = vmatprep.subr.mxu0 0.0
    %960 = vmatpush1.xpose.msra.mxu0 0.0
    %961 = vmatprep.subr.mxu0 0.0
    %962 = vmatpush1.xpose.msra.mxu0 0.0
    %963 = vmatprep.subr.mxu0 0.0
    %964 = vmatpush1.xpose.msra.mxu0 0.0
    %965 = vmatprep.subr.mxu0 0.0
    %966 = vmatpush1.xpose.msra.mxu0 0.0
    %967 = vmatprep.subr.mxu0 0.0
    %968 = vmatpush1.xpose.msra.mxu0 0.0
    %969 = vmatprep.subr.mxu0 0.0
    %970 = vmatpush1.xpose.msra.mxu0 0.0
    %971 = vmatprep.subr.mxu0 0.0
    %972 = vmatpush1.xpose.msra.mxu0 0.0
    %973 = vmatprep.subr.mxu0 0.0
    %974 = vmatpush1.xpose.msra.mxu0 0.0
    %975 = vmatprep.subr.mxu0 0.0
    %976 = vmatpush1.xpose.msra.mxu0 0.0
    %977 = vmatprep.subr.mxu0 0.0
    %978 = vmatpush1.xpose.msra.mxu0 0.0
    %979 = vmatprep.subr.mxu0 0.0
    %980 = vmatpush1.xpose.msra.mxu0 0.0
    %981 = vmatprep.mubr.f32.mxu0 %v62
    %982 = vmatmul.mubr.f32.gmra.mrb[0].mxu0 %v61
    %v983 = vpop.f32.mrb[0].mxu0
    %v984 = vadd.f32 %v914, %v983
    %v985 = vpop.f32.mrb[0].mxu0
    %986 = vdwg.mxu0
    %987 = vmatprep.subr.mxu0 %v111
    %988 = vmatpush1.xpose.msra.mxu0 %v110
    %989 = vmatprep.subr.mxu0 0.0
    %990 = vmatpush1.xpose.msra.mxu0 0.0
    %991 = vmatprep.subr.mxu0 0.0
    %992 = vmatpush1.xpose.msra.mxu0 0.0
    %993 = vmatprep.subr.mxu0 0.0
    %994 = vmatpush1.xpose.msra.mxu0 0.0
    %995 = vmatprep.subr.mxu0 0.0
    %996 = vmatpush1.xpose.msra.mxu0 0.0
    %997 = vmatprep.subr.mxu0 0.0
    %998 = vmatpush1.xpose.msra.mxu0 0.0
    %999 = vmatprep.subr.mxu0 0.0
    %1000 = vmatpush1.xpose.msra.mxu0 0.0
    %1001 = vmatprep.subr.mxu0 0.0
    %1002 = vmatpush1.xpose.msra.mxu0 0.0
    %1003 = vmatprep.subr.mxu0 0.0
    %1004 = vmatpush1.xpose.msra.mxu0 0.0
    %1005 = vmatprep.subr.mxu0 0.0
    %1006 = vmatpush1.xpose.msra.mxu0 0.0
    %1007 = vmatprep.subr.mxu0 0.0
    %1008 = vmatpush1.xpose.msra.mxu0 0.0
    %1009 = vmatprep.subr.mxu0 0.0
    %1010 = vmatpush1.xpose.msra.mxu0 0.0
    %1011 = vmatprep.subr.mxu0 0.0
    %1012 = vmatpush1.xpose.msra.mxu0 0.0
    %1013 = vmatprep.subr.mxu0 0.0
    %1014 = vmatpush1.xpose.msra.mxu0 0.0
    %1015 = vmatprep.subr.mxu0 0.0
    %1016 = vmatpush1.xpose.msra.mxu0 0.0
    %1017 = vmatprep.subr.mxu0 0.0
    %1018 = vmatpush1.xpose.msra.mxu0 0.0
    %1019 = vmatprep.subr.mxu0 0.0
    %1020 = vmatpush1.xpose.msra.mxu0 0.0
    %1021 = vmatprep.subr.mxu0 0.0
    %1022 = vmatpush1.xpose.msra.mxu0 0.0
    %1023 = vmatprep.subr.mxu0 0.0
    %1024 = vmatpush1.xpose.msra.mxu0 0.0
    %1025 = vmatprep.subr.mxu0 0.0
    %1026 = vmatpush1.xpose.msra.mxu0 0.0
    %1027 = vmatprep.subr.mxu0 0.0
    %1028 = vmatpush1.xpose.msra.mxu0 0.0
    %1029 = vmatprep.subr.mxu0 0.0
    %1030 = vmatpush1.xpose.msra.mxu0 0.0
    %1031 = vmatprep.subr.mxu0 0.0
    %1032 = vmatpush1.xpose.msra.mxu0 0.0
    %1033 = vmatprep.subr.mxu0 0.0
    %1034 = vmatpush1.xpose.msra.mxu0 0.0
    %1035 = vmatprep.subr.mxu0 0.0
    %1036 = vmatpush1.xpose.msra.mxu0 0.0
    %1037 = vmatprep.subr.mxu0 0.0
    %1038 = vmatpush1.xpose.msra.mxu0 0.0
    %1039 = vmatprep.subr.mxu0 0.0
    %1040 = vmatpush1.xpose.msra.mxu0 0.0
    %1041 = vmatprep.subr.mxu0 0.0
    %1042 = vmatpush1.xpose.msra.mxu0 0.0
    %1043 = vmatprep.subr.mxu0 0.0
    %1044 = vmatpush1.xpose.msra.mxu0 0.0
    %1045 = vmatprep.subr.mxu0 0.0
    %1046 = vmatpush1.xpose.msra.mxu0 0.0
    %1047 = vmatprep.subr.mxu0 0.0
    %1048 = vmatpush1.xpose.msra.mxu0 0.0
    %1049 = vmatprep.subr.mxu0 0.0
    %1050 = vmatpush1.xpose.msra.mxu0 0.0
    %1051 = vmatprep.mubr.f32.mxu0 %v64
    %1052 = vmatmul.mubr.f32.gmra.mrb[0].mxu0 %v63
    %v1053 = vpop.f32.mrb[0].mxu0
    %v1054 = vadd.f32 %v984, %v1053
    %v1055 = vpop.f32.mrb[0].mxu0
    %1056 = vdwg.mxu0
    %1057 = vmatprep.subr.mxu0 %v113
    %1058 = vmatpush1.xpose.msra.mxu0 %v112
    %1059 = vmatprep.subr.mxu0 0.0
    %1060 = vmatpush1.xpose.msra.mxu0 0.0
    %1061 = vmatprep.subr.mxu0 0.0
    %1062 = vmatpush1.xpose.msra.mxu0 0.0
    %1063 = vmatprep.subr.mxu0 0.0
    %1064 = vmatpush1.xpose.msra.mxu0 0.0
    %1065 = vmatprep.subr.mxu0 0.0
    %1066 = vmatpush1.xpose.msra.mxu0 0.0
    %1067 = vmatprep.subr.mxu0 0.0
    %1068 = vmatpush1.xpose.msra.mxu0 0.0
    %1069 = vmatprep.subr.mxu0 0.0
    %1070 = vmatpush1.xpose.msra.mxu0 0.0
    %1071 = vmatprep.subr.mxu0 0.0
    %1072 = vmatpush1.xpose.msra.mxu0 0.0
    %1073 = vmatprep.subr.mxu0 0.0
    %1074 = vmatpush1.xpose.msra.mxu0 0.0
    %1075 = vmatprep.subr.mxu0 0.0
    %1076 = vmatpush1.xpose.msra.mxu0 0.0
    %1077 = vmatprep.subr.mxu0 0.0
    %1078 = vmatpush1.xpose.msra.mxu0 0.0
    %1079 = vmatprep.subr.mxu0 0.0
    %1080 = vmatpush1.xpose.msra.mxu0 0.0
    %1081 = vmatprep.subr.mxu0 0.0
    %1082 = vmatpush1.xpose.msra.mxu0 0.0
    %1083 = vmatprep.subr.mxu0 0.0
    %1084 = vmatpush1.xpose.msra.mxu0 0.0
    %1085 = vmatprep.subr.mxu0 0.0
    %1086 = vmatpush1.xpose.msra.mxu0 0.0
    %1087 = vmatprep.subr.mxu0 0.0
    %1088 = vmatpush1.xpose.msra.mxu0 0.0
    %1089 = vmatprep.subr.mxu0 0.0
    %1090 = vmatpush1.xpose.msra.mxu0 0.0
    %1091 = vmatprep.subr.mxu0 0.0
    %1092 = vmatpush1.xpose.msra.mxu0 0.0
    %1093 = vmatprep.subr.mxu0 0.0
    %1094 = vmatpush1.xpose.msra.mxu0 0.0
    %1095 = vmatprep.subr.mxu0 0.0
    %1096 = vmatpush1.xpose.msra.mxu0 0.0
    %1097 = vmatprep.subr.mxu0 0.0
    %1098 = vmatpush1.xpose.msra.mxu0 0.0
    %1099 = vmatprep.subr.mxu0 0.0
    %1100 = vmatpush1.xpose.msra.mxu0 0.0
    %1101 = vmatprep.subr.mxu0 0.0
    %1102 = vmatpush1.xpose.msra.mxu0 0.0
    %1103 = vmatprep.subr.mxu0 0.0
    %1104 = vmatpush1.xpose.msra.mxu0 0.0
    %1105 = vmatprep.subr.mxu0 0.0
    %1106 = vmatpush1.xpose.msra.mxu0 0.0
    %1107 = vmatprep.subr.mxu0 0.0
    %1108 = vmatpush1.xpose.msra.mxu0 0.0
    %1109 = vmatprep.subr.mxu0 0.0
    %1110 = vmatpush1.xpose.msra.mxu0 0.0
    %1111 = vmatprep.subr.mxu0 0.0
    %1112 = vmatpush1.xpose.msra.mxu0 0.0
    %1113 = vmatprep.subr.mxu0 0.0
    %1114 = vmatpush1.xpose.msra.mxu0 0.0
    %1115 = vmatprep.subr.mxu0 0.0
    %1116 = vmatpush1.xpose.msra.mxu0 0.0
    %1117 = vmatprep.subr.mxu0 0.0
    %1118 = vmatpush1.xpose.msra.mxu0 0.0
    %1119 = vmatprep.subr.mxu0 0.0
    %1120 = vmatpush1.xpose.msra.mxu0 0.0
    %1121 = vmatprep.mubr.f32.mxu0 %v66
    %1122 = vmatmul.mubr.f32.gmra.mrb[0].mxu0 %v65
    %v1123 = vpop.f32.mrb[0].mxu0
    %v1124 = vadd.f32 %v1054, %v1123
    %v1125 = vpop.f32.mrb[0].mxu0
    %1126 = vdwg.mxu0
    %1127 = vmatprep.subr.mxu0 %v115
    %1128 = vmatpush1.xpose.msra.mxu0 %v114
    %1129 = vmatprep.subr.mxu0 0.0
    %1130 = vmatpush1.xpose.msra.mxu0 0.0
    %1131 = vmatprep.subr.mxu0 0.0
    %1132 = vmatpush1.xpose.msra.mxu0 0.0
    %1133 = vmatprep.subr.mxu0 0.0
    %1134 = vmatpush1.xpose.msra.mxu0 0.0
    %1135 = vmatprep.subr.mxu0 0.0
    %1136 = vmatpush1.xpose.msra.mxu0 0.0
    %1137 = vmatprep.subr.mxu0 0.0
    %1138 = vmatpush1.xpose.msra.mxu0 0.0
    %1139 = vmatprep.subr.mxu0 0.0
    %1140 = vmatpush1.xpose.msra.mxu0 0.0
    %1141 = vmatprep.subr.mxu0 0.0
    %1142 = vmatpush1.xpose.msra.mxu0 0.0
    %1143 = vmatprep.subr.mxu0 0.0
    %1144 = vmatpush1.xpose.msra.mxu0 0.0
    %1145 = vmatprep.subr.mxu0 0.0
    %1146 = vmatpush1.xpose.msra.mxu0 0.0
    %1147 = vmatprep.subr.mxu0 0.0
    %1148 = vmatpush1.xpose.msra.mxu0 0.0
    %1149 = vmatprep.subr.mxu0 0.0
    %1150 = vmatpush1.xpose.msra.mxu0 0.0
    %1151 = vmatprep.subr.mxu0 0.0
    %1152 = vmatpush1.xpose.msra.mxu0 0.0
    %1153 = vmatprep.subr.mxu0 0.0
    %1154 = vmatpush1.xpose.msra.mxu0 0.0
    %1155 = vmatprep.subr.mxu0 0.0
    %1156 = vmatpush1.xpose.msra.mxu0 0.0
    %1157 = vmatprep.subr.mxu0 0.0
    %1158 = vmatpush1.xpose.msra.mxu0 0.0
    %1159 = vmatprep.subr.mxu0 0.0
    %1160 = vmatpush1.xpose.msra.mxu0 0.0
    %1161 = vmatprep.subr.mxu0 0.0
    %1162 = vmatpush1.xpose.msra.mxu0 0.0
    %1163 = vmatprep.subr.mxu0 0.0
    %1164 = vmatpush1.xpose.msra.mxu0 0.0
    %1165 = vmatprep.subr.mxu0 0.0
    %1166 = vmatpush1.xpose.msra.mxu0 0.0
    %1167 = vmatprep.subr.mxu0 0.0
    %1168 = vmatpush1.xpose.msra.mxu0 0.0
    %1169 = vmatprep.subr.mxu0 0.0
    %1170 = vmatpush1.xpose.msra.mxu0 0.0
    %1171 = vmatprep.subr.mxu0 0.0
    %1172 = vmatpush1.xpose.msra.mxu0 0.0
    %1173 = vmatprep.subr.mxu0 0.0
    %1174 = vmatpush1.xpose.msra.mxu0 0.0
    %1175 = vmatprep.subr.mxu0 0.0
    %1176 = vmatpush1.xpose.msra.mxu0 0.0
    %1177 = vmatprep.subr.mxu0 0.0
    %1178 = vmatpush1.xpose.msra.mxu0 0.0
    %1179 = vmatprep.subr.mxu0 0.0
    %1180 = vmatpush1.xpose.msra.mxu0 0.0
    %1181 = vmatprep.subr.mxu0 0.0
    %1182 = vmatpush1.xpose.msra.mxu0 0.0
    %1183 = vmatprep.subr.mxu0 0.0
    %1184 = vmatpush1.xpose.msra.mxu0 0.0
    %1185 = vmatprep.subr.mxu0 0.0
    %1186 = vmatpush1.xpose.msra.mxu0 0.0
    %1187 = vmatprep.subr.mxu0 0.0
    %1188 = vmatpush1.xpose.msra.mxu0 0.0
    %1189 = vmatprep.subr.mxu0 0.0
    %1190 = vmatpush1.xpose.msra.mxu0 0.0
    %1191 = vmatprep.mubr.f32.mxu0 %v68
    %1192 = vmatmul.mubr.f32.gmra.mrb[0].mxu0 %v67
    %v1193 = vpop.f32.mrb[0].mxu0
    %v1194 = vadd.f32 %v1124, %v1193
    %v1195 = vpop.f32.mrb[0].mxu0
    %1196 = vdwg.mxu0
    %1197 = vmatprep.subr.mxu0 %v117
    %1198 = vmatpush1.xpose.msra.mxu0 %v116
    %1199 = vmatprep.subr.mxu0 0.0
    %1200 = vmatpush1.xpose.msra.mxu0 0.0
    %1201 = vmatprep.subr.mxu0 0.0
    %1202 = vmatpush1.xpose.msra.mxu0 0.0
    %1203 = vmatprep.subr.mxu0 0.0
    %1204 = vmatpush1.xpose.msra.mxu0 0.0
    %1205 = vmatprep.subr.mxu0 0.0
    %1206 = vmatpush1.xpose.msra.mxu0 0.0
    %1207 = vmatprep.subr.mxu0 0.0
    %1208 = vmatpush1.xpose.msra.mxu0 0.0
    %1209 = vmatprep.subr.mxu0 0.0
    %1210 = vmatpush1.xpose.msra.mxu0 0.0
    %1211 = vmatprep.subr.mxu0 0.0
    %1212 = vmatpush1.xpose.msra.mxu0 0.0
    %1213 = vmatprep.subr.mxu0 0.0
    %1214 = vmatpush1.xpose.msra.mxu0 0.0
    %1215 = vmatprep.subr.mxu0 0.0
    %1216 = vmatpush1.xpose.msra.mxu0 0.0
    %1217 = vmatprep.subr.mxu0 0.0
    %1218 = vmatpush1.xpose.msra.mxu0 0.0
    %1219 = vmatprep.subr.mxu0 0.0
    %1220 = vmatpush1.xpose.msra.mxu0 0.0
    %1221 = vmatprep.subr.mxu0 0.0
    %1222 = vmatpush1.xpose.msra.mxu0 0.0
    %1223 = vmatprep.subr.mxu0 0.0
    %1224 = vmatpush1.xpose.msra.mxu0 0.0
    %1225 = vmatprep.subr.mxu0 0.0
    %1226 = vmatpush1.xpose.msra.mxu0 0.0
    %1227 = vmatprep.subr.mxu0 0.0
    %1228 = vmatpush1.xpose.msra.mxu0 0.0
    %1229 = vmatprep.subr.mxu0 0.0
    %1230 = vmatpush1.xpose.msra.mxu0 0.0
    %1231 = vmatprep.subr.mxu0 0.0
    %1232 = vmatpush1.xpose.msra.mxu0 0.0
    %1233 = vmatprep.subr.mxu0 0.0
    %1234 = vmatpush1.xpose.msra.mxu0 0.0
    %1235 = vmatprep.subr.mxu0 0.0
    %1236 = vmatpush1.xpose.msra.mxu0 0.0
    %1237 = vmatprep.subr.mxu0 0.0
    %1238 = vmatpush1.xpose.msra.mxu0 0.0
    %1239 = vmatprep.subr.mxu0 0.0
    %1240 = vmatpush1.xpose.msra.mxu0 0.0
    %1241 = vmatprep.subr.mxu0 0.0
    %1242 = vmatpush1.xpose.msra.mxu0 0.0
    %1243 = vmatprep.subr.mxu0 0.0
    %1244 = vmatpush1.xpose.msra.mxu0 0.0
    %1245 = vmatprep.subr.mxu0 0.0
    %1246 = vmatpush1.xpose.msra.mxu0 0.0
    %1247 = vmatprep.subr.mxu0 0.0
    %1248 = vmatpush1.xpose.msra.mxu0 0.0
    %1249 = vmatprep.subr.mxu0 0.0
    %1250 = vmatpush1.xpose.msra.mxu0 0.0
    %1251 = vmatprep.subr.mxu0 0.0
    %1252 = vmatpush1.xpose.msra.mxu0 0.0
    %1253 = vmatprep.subr.mxu0 0.0
    %1254 = vmatpush1.xpose.msra.mxu0 0.0
    %1255 = vmatprep.subr.mxu0 0.0
    %1256 = vmatpush1.xpose.msra.mxu0 0.0
    %1257 = vmatprep.subr.mxu0 0.0
    %1258 = vmatpush1.xpose.msra.mxu0 0.0
    %1259 = vmatprep.subr.mxu0 0.0
    %1260 = vmatpush1.xpose.msra.mxu0 0.0
    %1261 = vmatprep.mubr.f32.mxu0 %v70
    %1262 = vmatmul.mubr.f32.gmra.mrb[0].mxu0 %v69
    %v1263 = vpop.f32.mrb[0].mxu0
    %v1264 = vadd.f32 %v1194, %v1263
    %v1265 = vpop.f32.mrb[0].mxu0
    %1266 = vdwg.mxu0
    %1267 = vmatprep.subr.mxu0 %v119
    %1268 = vmatpush1.xpose.msra.mxu0 %v118
    %1269 = vmatprep.subr.mxu0 0.0
    %1270 = vmatpush1.xpose.msra.mxu0 0.0
    %1271 = vmatprep.subr.mxu0 0.0
    %1272 = vmatpush1.xpose.msra.mxu0 0.0
    %1273 = vmatprep.subr.mxu0 0.0
    %1274 = vmatpush1.xpose.msra.mxu0 0.0
    %1275 = vmatprep.subr.mxu0 0.0
    %1276 = vmatpush1.xpose.msra.mxu0 0.0
    %1277 = vmatprep.subr.mxu0 0.0
    %1278 = vmatpush1.xpose.msra.mxu0 0.0
    %1279 = vmatprep.subr.mxu0 0.0
    %1280 = vmatpush1.xpose.msra.mxu0 0.0
    %1281 = vmatprep.subr.mxu0 0.0
    %1282 = vmatpush1.xpose.msra.mxu0 0.0
    %1283 = vmatprep.subr.mxu0 0.0
    %1284 = vmatpush1.xpose.msra.mxu0 0.0
    %1285 = vmatprep.subr.mxu0 0.0
    %1286 = vmatpush1.xpose.msra.mxu0 0.0
    %1287 = vmatprep.subr.mxu0 0.0
    %1288 = vmatpush1.xpose.msra.mxu0 0.0
    %1289 = vmatprep.subr.mxu0 0.0
    %1290 = vmatpush1.xpose.msra.mxu0 0.0
    %1291 = vmatprep.subr.mxu0 0.0
    %1292 = vmatpush1.xpose.msra.mxu0 0.0
    %1293 = vmatprep.subr.mxu0 0.0
    %1294 = vmatpush1.xpose.msra.mxu0 0.0
    %1295 = vmatprep.subr.mxu0 0.0
    %1296 = vmatpush1.xpose.msra.mxu0 0.0
    %1297 = vmatprep.subr.mxu0 0.0
    %1298 = vmatpush1.xpose.msra.mxu0 0.0
    %1299 = vmatprep.subr.mxu0 0.0
    %1300 = vmatpush1.xpose.msra.mxu0 0.0
    %1301 = vmatprep.subr.mxu0 0.0
    %1302 = vmatpush1.xpose.msra.mxu0 0.0
    %1303 = vmatprep.subr.mxu0 0.0
    %1304 = vmatpush1.xpose.msra.mxu0 0.0
    %1305 = vmatprep.subr.mxu0 0.0
    %1306 = vmatpush1.xpose.msra.mxu0 0.0
    %1307 = vmatprep.subr.mxu0 0.0
    %1308 = vmatpush1.xpose.msra.mxu0 0.0
    %1309 = vmatprep.subr.mxu0 0.0
    %1310 = vmatpush1.xpose.msra.mxu0 0.0
    %1311 = vmatprep.subr.mxu0 0.0
    %1312 = vmatpush1.xpose.msra.mxu0 0.0
    %1313 = vmatprep.subr.mxu0 0.0
    %1314 = vmatpush1.xpose.msra.mxu0 0.0
    %1315 = vmatprep.subr.mxu0 0.0
    %1316 = vmatpush1.xpose.msra.mxu0 0.0
    %1317 = vmatprep.subr.mxu0 0.0
    %1318 = vmatpush1.xpose.msra.mxu0 0.0
    %1319 = vmatprep.subr.mxu0 0.0
    %1320 = vmatpush1.xpose.msra.mxu0 0.0
    %1321 = vmatprep.subr.mxu0 0.0
    %1322 = vmatpush1.xpose.msra.mxu0 0.0
    %1323 = vmatprep.subr.mxu0 0.0
    %1324 = vmatpush1.xpose.msra.mxu0 0.0
    %1325 = vmatprep.subr.mxu0 0.0
    %1326 = vmatpush1.xpose.msra.mxu0 0.0
    %1327 = vmatprep.subr.mxu0 0.0
    %1328 = vmatpush1.xpose.msra.mxu0 0.0
    %1329 = vmatprep.subr.mxu0 0.0
    %1330 = vmatpush1.xpose.msra.mxu0 0.0
    %1331 = vmatprep.mubr.f32.mxu0 %v72
    %1332 = vmatmul.mubr.f32.gmra.mrb[0].mxu0 %v71
    %v1333 = vpop.f32.mrb[0].mxu0
    %v1334 = vadd.f32 %v1264, %v1333
    %v1335 = vpop.f32.mrb[0].mxu0
    %1336 = vdwg.mxu0
    %1337 = vmatprep.subr.mxu0 %v121
    %1338 = vmatpush1.xpose.msra.mxu0 %v120
    %1339 = vmatprep.subr.mxu0 0.0
    %1340 = vmatpush1.xpose.msra.mxu0 0.0
    %1341 = vmatprep.subr.mxu0 0.0
    %1342 = vmatpush1.xpose.msra.mxu0 0.0
    %1343 = vmatprep.subr.mxu0 0.0
    %1344 = vmatpush1.xpose.msra.mxu0 0.0
    %1345 = vmatprep.subr.mxu0 0.0
    %1346 = vmatpush1.xpose.msra.mxu0 0.0
    %1347 = vmatprep.subr.mxu0 0.0
    %1348 = vmatpush1.xpose.msra.mxu0 0.0
    %1349 = vmatprep.subr.mxu0 0.0
    %1350 = vmatpush1.xpose.msra.mxu0 0.0
    %1351 = vmatprep.subr.mxu0 0.0
    %1352 = vmatpush1.xpose.msra.mxu0 0.0
    %1353 = vmatprep.subr.mxu0 0.0
    %1354 = vmatpush1.xpose.msra.mxu0 0.0
    %1355 = vmatprep.subr.mxu0 0.0
    %1356 = vmatpush1.xpose.msra.mxu0 0.0
    %1357 = vmatprep.subr.mxu0 0.0
    %1358 = vmatpush1.xpose.msra.mxu0 0.0
    %1359 = vmatprep.subr.mxu0 0.0
    %1360 = vmatpush1.xpose.msra.mxu0 0.0
    %1361 = vmatprep.subr.mxu0 0.0
    %1362 = vmatpush1.xpose.msra.mxu0 0.0
    %1363 = vmatprep.subr.mxu0 0.0
    %1364 = vmatpush1.xpose.msra.mxu0 0.0
    %1365 = vmatprep.subr.mxu0 0.0
    %1366 = vmatpush1.xpose.msra.mxu0 0.0
    %1367 = vmatprep.subr.mxu0 0.0
    %1368 = vmatpush1.xpose.msra.mxu0 0.0
    %1369 = vmatprep.subr.mxu0 0.0
    %1370 = vmatpush1.xpose.msra.mxu0 0.0
    %1371 = vmatprep.subr.mxu0 0.0
    %1372 = vmatpush1.xpose.msra.mxu0 0.0
    %1373 = vmatprep.subr.mxu0 0.0
    %1374 = vmatpush1.xpose.msra.mxu0 0.0
    %1375 = vmatprep.subr.mxu0 0.0
    %1376 = vmatpush1.xpose.msra.mxu0 0.0
    %1377 = vmatprep.subr.mxu0 0.0
    %1378 = vmatpush1.xpose.msra.mxu0 0.0
    %1379 = vmatprep.subr.mxu0 0.0
    %1380 = vmatpush1.xpose.msra.mxu0 0.0
    %1381 = vmatprep.subr.mxu0 0.0
    %1382 = vmatpush1.xpose.msra.mxu0 0.0
    %1383 = vmatprep.subr.mxu0 0.0
    %1384 = vmatpush1.xpose.msra.mxu0 0.0
    %1385 = vmatprep.subr.mxu0 0.0
    %1386 = vmatpush1.xpose.msra.mxu0 0.0
    %1387 = vmatprep.subr.mxu0 0.0
    %1388 = vmatpush1.xpose.msra.mxu0 0.0
    %1389 = vmatprep.subr.mxu0 0.0
    %1390 = vmatpush1.xpose.msra.mxu0 0.0
    %1391 = vmatprep.subr.mxu0 0.0
    %1392 = vmatpush1.xpose.msra.mxu0 0.0
    %1393 = vmatprep.subr.mxu0 0.0
    %1394 = vmatpush1.xpose.msra.mxu0 0.0
    %1395 = vmatprep.subr.mxu0 0.0
    %1396 = vmatpush1.xpose.msra.mxu0 0.0
    %1397 = vmatprep.subr.mxu0 0.0
    %1398 = vmatpush1.xpose.msra.mxu0 0.0
    %1399 = vmatprep.subr.mxu0 0.0
    %1400 = vmatpush1.xpose.msra.mxu0 0.0
    %1401 = vmatprep.mubr.f32.mxu0 %v74
    %1402 = vmatmul.mubr.f32.gmra.mrb[0].mxu0 %v73
    %v1403 = vpop.f32.mrb[0].mxu0
    %v1404 = vadd.f32 %v1334, %v1403
    %v1405 = vpop.f32.mrb[0].mxu0
    %1406 = vdwg.mxu0
    %1407 = vmatprep.subr.mxu0 %v123
    %1408 = vmatpush1.xpose.msra.mxu0 %v122
    %1409 = vmatprep.subr.mxu0 0.0
    %1410 = vmatpush1.xpose.msra.mxu0 0.0
    %1411 = vmatprep.subr.mxu0 0.0
    %1412 = vmatpush1.xpose.msra.mxu0 0.0
    %1413 = vmatprep.subr.mxu0 0.0
    %1414 = vmatpush1.xpose.msra.mxu0 0.0
    %1415 = vmatprep.subr.mxu0 0.0
    %1416 = vmatpush1.xpose.msra.mxu0 0.0
    %1417 = vmatprep.subr.mxu0 0.0
    %1418 = vmatpush1.xpose.msra.mxu0 0.0
    %1419 = vmatprep.subr.mxu0 0.0
    %1420 = vmatpush1.xpose.msra.mxu0 0.0
    %1421 = vmatprep.subr.mxu0 0.0
    %1422 = vmatpush1.xpose.msra.mxu0 0.0
    %1423 = vmatprep.subr.mxu0 0.0
    %1424 = vmatpush1.xpose.msra.mxu0 0.0
    %1425 = vmatprep.subr.mxu0 0.0
    %1426 = vmatpush1.xpose.msra.mxu0 0.0
    %1427 = vmatprep.subr.mxu0 0.0
    %1428 = vmatpush1.xpose.msra.mxu0 0.0
    %1429 = vmatprep.subr.mxu0 0.0
    %1430 = vmatpush1.xpose.msra.mxu0 0.0
    %1431 = vmatprep.subr.mxu0 0.0
    %1432 = vmatpush1.xpose.msra.mxu0 0.0
    %1433 = vmatprep.subr.mxu0 0.0
    %1434 = vmatpush1.xpose.msra.mxu0 0.0
    %1435 = vmatprep.subr.mxu0 0.0
    %1436 = vmatpush1.xpose.msra.mxu0 0.0
    %1437 = vmatprep.subr.mxu0 0.0
    %1438 = vmatpush1.xpose.msra.mxu0 0.0
    %1439 = vmatprep.subr.mxu0 0.0
    %1440 = vmatpush1.xpose.msra.mxu0 0.0
    %1441 = vmatprep.subr.mxu0 0.0
    %1442 = vmatpush1.xpose.msra.mxu0 0.0
    %1443 = vmatprep.subr.mxu0 0.0
    %1444 = vmatpush1.xpose.msra.mxu0 0.0
    %1445 = vmatprep.subr.mxu0 0.0
    %1446 = vmatpush1.xpose.msra.mxu0 0.0
    %1447 = vmatprep.subr.mxu0 0.0
    %1448 = vmatpush1.xpose.msra.mxu0 0.0
    %1449 = vmatprep.subr.mxu0 0.0
    %1450 = vmatpush1.xpose.msra.mxu0 0.0
    %1451 = vmatprep.subr.mxu0 0.0
    %1452 = vmatpush1.xpose.msra.mxu0 0.0
    %1453 = vmatprep.subr.mxu0 0.0
    %1454 = vmatpush1.xpose.msra.mxu0 0.0
    %1455 = vmatprep.subr.mxu0 0.0
    %1456 = vmatpush1.xpose.msra.mxu0 0.0
    %1457 = vmatprep.subr.mxu0 0.0
    %1458 = vmatpush1.xpose.msra.mxu0 0.0
    %1459 = vmatprep.subr.mxu0 0.0
    %1460 = vmatpush1.xpose.msra.mxu0 0.0
    %1461 = vmatprep.subr.mxu0 0.0
    %1462 = vmatpush1.xpose.msra.mxu0 0.0
    %1463 = vmatprep.subr.mxu0 0.0
    %1464 = vmatpush1.xpose.msra.mxu0 0.0
    %1465 = vmatprep.subr.mxu0 0.0
    %1466 = vmatpush1.xpose.msra.mxu0 0.0
    %1467 = vmatprep.subr.mxu0 0.0
    %1468 = vmatpush1.xpose.msra.mxu0 0.0
    %1469 = vmatprep.subr.mxu0 0.0
    %1470 = vmatpush1.xpose.msra.mxu0 0.0
    %1471 = vmatprep.mubr.f32.mxu0 %v76
    %1472 = vmatmul.mubr.f32.gmra.mrb[0].mxu0 %v75
    %v1473 = vpop.f32.mrb[0].mxu0
    %v1474 = vadd.f32 %v1404, %v1473
    %v1475 = vpop.f32.mrb[0].mxu0
    %1476 = vdwg.mxu0
    %1477 = vmatprep.subr.mxu0 %v125
    %1478 = vmatpush1.xpose.msra.mxu0 %v124
    %1479 = vmatprep.subr.mxu0 0.0
    %1480 = vmatpush1.xpose.msra.mxu0 0.0
    %1481 = vmatprep.subr.mxu0 0.0
    %1482 = vmatpush1.xpose.msra.mxu0 0.0
    %1483 = vmatprep.subr.mxu0 0.0
    %1484 = vmatpush1.xpose.msra.mxu0 0.0
    %1485 = vmatprep.subr.mxu0 0.0
    %1486 = vmatpush1.xpose.msra.mxu0 0.0
    %1487 = vmatprep.subr.mxu0 0.0
    %1488 = vmatpush1.xpose.msra.mxu0 0.0
    %1489 = vmatprep.subr.mxu0 0.0
    %1490 = vmatpush1.xpose.msra.mxu0 0.0
    %1491 = vmatprep.subr.mxu0 0.0
    %1492 = vmatpush1.xpose.msra.mxu0 0.0
    %1493 = vmatprep.subr.mxu0 0.0
    %1494 = vmatpush1.xpose.msra.mxu0 0.0
    %1495 = vmatprep.subr.mxu0 0.0
    %1496 = vmatpush1.xpose.msra.mxu0 0.0
    %1497 = vmatprep.subr.mxu0 0.0
    %1498 = vmatpush1.xpose.msra.mxu0 0.0
    %1499 = vmatprep.subr.mxu0 0.0
    %1500 = vmatpush1.xpose.msra.mxu0 0.0
    %1501 = vmatprep.subr.mxu0 0.0
    %1502 = vmatpush1.xpose.msra.mxu0 0.0
    %1503 = vmatprep.subr.mxu0 0.0
    %1504 = vmatpush1.xpose.msra.mxu0 0.0
    %1505 = vmatprep.subr.mxu0 0.0
    %1506 = vmatpush1.xpose.msra.mxu0 0.0
    %1507 = vmatprep.subr.mxu0 0.0
    %1508 = vmatpush1.xpose.msra.mxu0 0.0
    %1509 = vmatprep.subr.mxu0 0.0
    %1510 = vmatpush1.xpose.msra.mxu0 0.0
    %1511 = vmatprep.subr.mxu0 0.0
    %1512 = vmatpush1.xpose.msra.mxu0 0.0
    %1513 = vmatprep.subr.mxu0 0.0
    %1514 = vmatpush1.xpose.msra.mxu0 0.0
    %1515 = vmatprep.subr.mxu0 0.0
    %1516 = vmatpush1.xpose.msra.mxu0 0.0
    %1517 = vmatprep.subr.mxu0 0.0
    %1518 = vmatpush1.xpose.msra.mxu0 0.0
    %1519 = vmatprep.subr.mxu0 0.0
    %1520 = vmatpush1.xpose.msra.mxu0 0.0
    %1521 = vmatprep.subr.mxu0 0.0
    %1522 = vmatpush1.xpose.msra.mxu0 0.0
    %1523 = vmatprep.subr.mxu0 0.0
    %1524 = vmatpush1.xpose.msra.mxu0 0.0
    %1525 = vmatprep.subr.mxu0 0.0
    %1526 = vmatpush1.xpose.msra.mxu0 0.0
    %1527 = vmatprep.subr.mxu0 0.0
    %1528 = vmatpush1.xpose.msra.mxu0 0.0
    %1529 = vmatprep.subr.mxu0 0.0
    %1530 = vmatpush1.xpose.msra.mxu0 0.0
    %1531 = vmatprep.subr.mxu0 0.0
    %1532 = vmatpush1.xpose.msra.mxu0 0.0
    %1533 = vmatprep.subr.mxu0 0.0
    %1534 = vmatpush1.xpose.msra.mxu0 0.0
    %1535 = vmatprep.subr.mxu0 0.0
    %1536 = vmatpush1.xpose.msra.mxu0 0.0
    %1537 = vmatprep.subr.mxu0 0.0
    %1538 = vmatpush1.xpose.msra.mxu0 0.0
    %1539 = vmatprep.subr.mxu0 0.0
    %1540 = vmatpush1.xpose.msra.mxu0 0.0
    %1541 = vmatprep.mubr.f32.mxu0 %v78
    %1542 = vmatmul.mubr.f32.gmra.mrb[0].mxu0 %v77
    %v1543 = vpop.f32.mrb[0].mxu0
    %v1544 = vadd.f32 %v1474, %v1543
    %v1545 = vpop.f32.mrb[0].mxu0
    %1546 = vdwg.mxu0
    %1547 = vmatprep.subr.mxu0 %v127
    %1548 = vmatpush1.xpose.msra.mxu0 %v126
    %1549 = vmatprep.subr.mxu0 0.0
    %1550 = vmatpush1.xpose.msra.mxu0 0.0
    %1551 = vmatprep.subr.mxu0 0.0
    %1552 = vmatpush1.xpose.msra.mxu0 0.0
    %1553 = vmatprep.subr.mxu0 0.0
    %1554 = vmatpush1.xpose.msra.mxu0 0.0
    %1555 = vmatprep.subr.mxu0 0.0
    %1556 = vmatpush1.xpose.msra.mxu0 0.0
    %1557 = vmatprep.subr.mxu0 0.0
    %1558 = vmatpush1.xpose.msra.mxu0 0.0
    %1559 = vmatprep.subr.mxu0 0.0
    %1560 = vmatpush1.xpose.msra.mxu0 0.0
    %1561 = vmatprep.subr.mxu0 0.0
    %1562 = vmatpush1.xpose.msra.mxu0 0.0
    %1563 = vmatprep.subr.mxu0 0.0
    %1564 = vmatpush1.xpose.msra.mxu0 0.0
    %1565 = vmatprep.subr.mxu0 0.0
    %1566 = vmatpush1.xpose.msra.mxu0 0.0
    %1567 = vmatprep.subr.mxu0 0.0
    %1568 = vmatpush1.xpose.msra.mxu0 0.0
    %1569 = vmatprep.subr.mxu0 0.0
    %1570 = vmatpush1.xpose.msra.mxu0 0.0
    %1571 = vmatprep.subr.mxu0 0.0
    %1572 = vmatpush1.xpose.msra.mxu0 0.0
    %1573 = vmatprep.subr.mxu0 0.0
    %1574 = vmatpush1.xpose.msra.mxu0 0.0
    %1575 = vmatprep.subr.mxu0 0.0
    %1576 = vmatpush1.xpose.msra.mxu0 0.0
    %1577 = vmatprep.subr.mxu0 0.0
    %1578 = vmatpush1.xpose.msra.mxu0 0.0
    %1579 = vmatprep.subr.mxu0 0.0
    %1580 = vmatpush1.xpose.msra.mxu0 0.0
    %1581 = vmatprep.subr.mxu0 0.0
    %1582 = vmatpush1.xpose.msra.mxu0 0.0
    %1583 = vmatprep.subr.mxu0 0.0
    %1584 = vmatpush1.xpose.msra.mxu0 0.0
    %1585 = vmatprep.subr.mxu0 0.0
    %1586 = vmatpush1.xpose.msra.mxu0 0.0
    %1587 = vmatprep.subr.mxu0 0.0
    %1588 = vmatpush1.xpose.msra.mxu0 0.0
    %1589 = vmatprep.subr.mxu0 0.0
    %1590 = vmatpush1.xpose.msra.mxu0 0.0
    %1591 = vmatprep.subr.mxu0 0.0
    %1592 = vmatpush1.xpose.msra.mxu0 0.0
    %1593 = vmatprep.subr.mxu0 0.0
    %1594 = vmatpush1.xpose.msra.mxu0 0.0
    %1595 = vmatprep.subr.mxu0 0.0
    %1596 = vmatpush1.xpose.msra.mxu0 0.0
    %1597 = vmatprep.subr.mxu0 0.0
    %1598 = vmatpush1.xpose.msra.mxu0 0.0
    %1599 = vmatprep.subr.mxu0 0.0
    %1600 = vmatpush1.xpose.msra.mxu0 0.0
    %1601 = vmatprep.subr.mxu0 0.0
    %1602 = vmatpush1.xpose.msra.mxu0 0.0
    %1603 = vmatprep.subr.mxu0 0.0
    %1604 = vmatpush1.xpose.msra.mxu0 0.0
    %1605 = vmatprep.subr.mxu0 0.0
    %1606 = vmatpush1.xpose.msra.mxu0 0.0
    %1607 = vmatprep.subr.mxu0 0.0
    %1608 = vmatpush1.xpose.msra.mxu0 0.0
    %1609 = vmatprep.subr.mxu0 0.0
    %1610 = vmatpush1.xpose.msra.mxu0 0.0
    %1611 = vmatprep.mubr.f32.mxu0 %v80
    %1612 = vmatmul.mubr.f32.gmra.mrb[0].mxu0 %v79
    %v1613 = vpop.f32.mrb[0].mxu0
    %v1614 = vadd.f32 %v1544, %v1613
    %v1615 = vpop.f32.mrb[0].mxu0
    %1616 = vdwg.mxu0
    %1617 = vmatprep.subr.mxu0 %v129
    %1618 = vmatpush1.xpose.msra.mxu0 %v128
    %1619 = vmatprep.subr.mxu0 0.0
    %1620 = vmatpush1.xpose.msra.mxu0 0.0
    %1621 = vmatprep.subr.mxu0 0.0
    %1622 = vmatpush1.xpose.msra.mxu0 0.0
    %1623 = vmatprep.subr.mxu0 0.0
    %1624 = vmatpush1.xpose.msra.mxu0 0.0
    %1625 = vmatprep.subr.mxu0 0.0
    %1626 = vmatpush1.xpose.msra.mxu0 0.0
    %1627 = vmatprep.subr.mxu0 0.0
    %1628 = vmatpush1.xpose.msra.mxu0 0.0
    %1629 = vmatprep.subr.mxu0 0.0
    %1630 = vmatpush1.xpose.msra.mxu0 0.0
    %1631 = vmatprep.subr.mxu0 0.0
    %1632 = vmatpush1.xpose.msra.mxu0 0.0
    %1633 = vmatprep.subr.mxu0 0.0
    %1634 = vmatpush1.xpose.msra.mxu0 0.0
    %1635 = vmatprep.subr.mxu0 0.0
    %1636 = vmatpush1.xpose.msra.mxu0 0.0
    %1637 = vmatprep.subr.mxu0 0.0
    %1638 = vmatpush1.xpose.msra.mxu0 0.0
    %1639 = vmatprep.subr.mxu0 0.0
    %1640 = vmatpush1.xpose.msra.mxu0 0.0
    %1641 = vmatprep.subr.mxu0 0.0
    %1642 = vmatpush1.xpose.msra.mxu0 0.0
    %1643 = vmatprep.subr.mxu0 0.0
    %1644 = vmatpush1.xpose.msra.mxu0 0.0
    %1645 = vmatprep.subr.mxu0 0.0
    %1646 = vmatpush1.xpose.msra.mxu0 0.0
    %1647 = vmatprep.subr.mxu0 0.0
    %1648 = vmatpush1.xpose.msra.mxu0 0.0
    %1649 = vmatprep.subr.mxu0 0.0
    %1650 = vmatpush1.xpose.msra.mxu0 0.0
    %1651 = vmatprep.subr.mxu0 0.0
    %1652 = vmatpush1.xpose.msra.mxu0 0.0
    %1653 = vmatprep.subr.mxu0 0.0
    %1654 = vmatpush1.xpose.msra.mxu0 0.0
    %1655 = vmatprep.subr.mxu0 0.0
    %1656 = vmatpush1.xpose.msra.mxu0 0.0
    %1657 = vmatprep.subr.mxu0 0.0
    %1658 = vmatpush1.xpose.msra.mxu0 0.0
    %1659 = vmatprep.subr.mxu0 0.0
    %1660 = vmatpush1.xpose.msra.mxu0 0.0
    %1661 = vmatprep.subr.mxu0 0.0
    %1662 = vmatpush1.xpose.msra.mxu0 0.0
    %1663 = vmatprep.subr.mxu0 0.0
    %1664 = vmatpush1.xpose.msra.mxu0 0.0
    %1665 = vmatprep.subr.mxu0 0.0
    %1666 = vmatpush1.xpose.msra.mxu0 0.0
    %1667 = vmatprep.subr.mxu0 0.0
    %1668 = vmatpush1.xpose.msra.mxu0 0.0
    %1669 = vmatprep.subr.mxu0 0.0
    %1670 = vmatpush1.xpose.msra.mxu0 0.0
    %1671 = vmatprep.subr.mxu0 0.0
    %1672 = vmatpush1.xpose.msra.mxu0 0.0
    %1673 = vmatprep.subr.mxu0 0.0
    %1674 = vmatpush1.xpose.msra.mxu0 0.0
    %1675 = vmatprep.subr.mxu0 0.0
    %1676 = vmatpush1.xpose.msra.mxu0 0.0
    %1677 = vmatprep.subr.mxu0 0.0
    %1678 = vmatpush1.xpose.msra.mxu0 0.0
    %1679 = vmatprep.subr.mxu0 0.0
    %1680 = vmatpush1.xpose.msra.mxu0 0.0
    %1681 = vmatprep.mubr.f32.mxu0 %v82
    %1682 = vmatmul.mubr.f32.gmra.mrb[0].mxu0 %v81
    %v1683 = vpop.f32.mrb[0].mxu0
    %v1684 = vadd.f32 %v1614, %v1683
    %v1685 = vpop.f32.mrb[0].mxu0
    %1686 = vdwg.mxu0
    %1687 = vmatprep.subr.mxu0 %v131
    %1688 = vmatpush1.xpose.msra.mxu0 %v130
    %1689 = vmatprep.subr.mxu0 0.0
    %1690 = vmatpush1.xpose.msra.mxu0 0.0
    %1691 = vmatprep.subr.mxu0 0.0
    %1692 = vmatpush1.xpose.msra.mxu0 0.0
    %1693 = vmatprep.subr.mxu0 0.0
    %1694 = vmatpush1.xpose.msra.mxu0 0.0
    %1695 = vmatprep.subr.mxu0 0.0
    %1696 = vmatpush1.xpose.msra.mxu0 0.0
    %1697 = vmatprep.subr.mxu0 0.0
    %1698 = vmatpush1.xpose.msra.mxu0 0.0
    %1699 = vmatprep.subr.mxu0 0.0
    %1700 = vmatpush1.xpose.msra.mxu0 0.0
    %1701 = vmatprep.subr.mxu0 0.0
    %1702 = vmatpush1.xpose.msra.mxu0 0.0
    %1703 = vmatprep.subr.mxu0 0.0
    %1704 = vmatpush1.xpose.msra.mxu0 0.0
    %1705 = vmatprep.subr.mxu0 0.0
    %1706 = vmatpush1.xpose.msra.mxu0 0.0
    %1707 = vmatprep.subr.mxu0 0.0
    %1708 = vmatpush1.xpose.msra.mxu0 0.0
    %1709 = vmatprep.subr.mxu0 0.0
    %1710 = vmatpush1.xpose.msra.mxu0 0.0
    %1711 = vmatprep.subr.mxu0 0.0
    %1712 = vmatpush1.xpose.msra.mxu0 0.0
    %1713 = vmatprep.subr.mxu0 0.0
    %1714 = vmatpush1.xpose.msra.mxu0 0.0
    %1715 = vmatprep.subr.mxu0 0.0
    %1716 = vmatpush1.xpose.msra.mxu0 0.0
    %1717 = vmatprep.subr.mxu0 0.0
    %1718 = vmatpush1.xpose.msra.mxu0 0.0
    %1719 = vmatprep.subr.mxu0 0.0
    %1720 = vmatpush1.xpose.msra.mxu0 0.0
    %1721 = vmatprep.subr.mxu0 0.0
    %1722 = vmatpush1.xpose.msra.mxu0 0.0
    %1723 = vmatprep.subr.mxu0 0.0
    %1724 = vmatpush1.xpose.msra.mxu0 0.0
    %1725 = vmatprep.subr.mxu0 0.0
    %1726 = vmatpush1.xpose.msra.mxu0 0.0
    %1727 = vmatprep.subr.mxu0 0.0
    %1728 = vmatpush1.xpose.msra.mxu0 0.0
    %1729 = vmatprep.subr.mxu0 0.0
    %1730 = vmatpush1.xpose.msra.mxu0 0.0
    %1731 = vmatprep.subr.mxu0 0.0
    %1732 = vmatpush1.xpose.msra.mxu0 0.0
    %1733 = vmatprep.subr.mxu0 0.0
    %1734 = vmatpush1.xpose.msra.mxu0 0.0
    %1735 = vmatprep.subr.mxu0 0.0
    %1736 = vmatpush1.xpose.msra.mxu0 0.0
    %1737 = vmatprep.subr.mxu0 0.0
    %1738 = vmatpush1.xpose.msra.mxu0 0.0
    %1739 = vmatprep.subr.mxu0 0.0
    %1740 = vmatpush1.xpose.msra.mxu0 0.0
    %1741 = vmatprep.subr.mxu0 0.0
    %1742 = vmatpush1.xpose.msra.mxu0 0.0
    %1743 = vmatprep.subr.mxu0 0.0
    %1744 = vmatpush1.xpose.msra.mxu0 0.0
    %1745 = vmatprep.subr.mxu0 0.0
    %1746 = vmatpush1.xpose.msra.mxu0 0.0
    %1747 = vmatprep.subr.mxu0 0.0
    %1748 = vmatpush1.xpose.msra.mxu0 0.0
    %1749 = vmatprep.subr.mxu0 0.0
    %1750 = vmatpush1.xpose.msra.mxu0 0.0
    %1751 = vmatprep.mubr.f32.mxu0 %v84
    %1752 = vmatmul.mubr.f32.gmra.mrb[0].mxu0 %v83
    %v1753 = vpop.f32.mrb[0].mxu0
    %v1754 = vadd.f32 %v1684, %v1753
    %v1755 = vpop.f32.mrb[0].mxu0
    %1756 = vdwg.mxu0
    %1757 = vmatprep.subr.mxu0 0.0
    %1758 = vmatpush1.xpose.msra.mxu0 %v145
    %1759 = vmatprep.subr.mxu0 0.0
    %1760 = vmatpush1.xpose.msra.mxu0 0.0
    %1761 = vmatprep.subr.mxu0 0.0
    %1762 = vmatpush1.xpose.msra.mxu0 0.0
    %1763 = vmatprep.subr.mxu0 0.0
    %1764 = vmatpush1.xpose.msra.mxu0 0.0
    %1765 = vmatprep.subr.mxu0 0.0
    %1766 = vmatpush1.xpose.msra.mxu0 0.0
    %1767 = vmatprep.subr.mxu0 0.0
    %1768 = vmatpush1.xpose.msra.mxu0 0.0
    %1769 = vmatprep.subr.mxu0 0.0
    %1770 = vmatpush1.xpose.msra.mxu0 0.0
    %1771 = vmatprep.subr.mxu0 0.0
    %1772 = vmatpush1.xpose.msra.mxu0 0.0
    %1773 = vmatprep.subr.mxu0 0.0
    %1774 = vmatpush1.xpose.msra.mxu0 0.0
    %1775 = vmatprep.subr.mxu0 0.0
    %1776 = vmatpush1.xpose.msra.mxu0 0.0
    %1777 = vmatprep.subr.mxu0 0.0
    %1778 = vmatpush1.xpose.msra.mxu0 0.0
    %1779 = vmatprep.subr.mxu0 0.0
    %1780 = vmatpush1.xpose.msra.mxu0 0.0
    %1781 = vmatprep.subr.mxu0 0.0
    %1782 = vmatpush1.xpose.msra.mxu0 0.0
    %1783 = vmatprep.subr.mxu0 0.0
    %1784 = vmatpush1.xpose.msra.mxu0 0.0
    %1785 = vmatprep.subr.mxu0 0.0
    %1786 = vmatpush1.xpose.msra.mxu0 0.0
    %1787 = vmatprep.subr.mxu0 0.0
    %1788 = vmatpush1.xpose.msra.mxu0 0.0
    %1789 = vmatprep.subr.mxu0 0.0
    %1790 = vmatpush1.xpose.msra.mxu0 0.0
    %1791 = vmatprep.subr.mxu0 0.0
    %1792 = vmatpush1.xpose.msra.mxu0 0.0
    %1793 = vmatprep.subr.mxu0 0.0
    %1794 = vmatpush1.xpose.msra.mxu0 0.0
    %1795 = vmatprep.subr.mxu0 0.0
    %1796 = vmatpush1.xpose.msra.mxu0 0.0
    %1797 = vmatprep.subr.mxu0 0.0
    %1798 = vmatpush1.xpose.msra.mxu0 0.0
    %1799 = vmatprep.subr.mxu0 0.0
    %1800 = vmatpush1.xpose.msra.mxu0 0.0
    %1801 = vmatprep.subr.mxu0 0.0
    %1802 = vmatpush1.xpose.msra.mxu0 0.0
    %1803 = vmatprep.subr.mxu0 0.0
    %1804 = vmatpush1.xpose.msra.mxu0 0.0
    %1805 = vmatprep.subr.mxu0 0.0
    %1806 = vmatpush1.xpose.msra.mxu0 0.0
    %1807 = vmatprep.subr.mxu0 0.0
    %1808 = vmatpush1.xpose.msra.mxu0 0.0
    %1809 = vmatprep.subr.mxu0 0.0
    %1810 = vmatpush1.xpose.msra.mxu0 0.0
    %1811 = vmatprep.subr.mxu0 0.0
    %1812 = vmatpush1.xpose.msra.mxu0 0.0
    %1813 = vmatprep.subr.mxu0 0.0
    %1814 = vmatpush1.xpose.msra.mxu0 0.0
    %1815 = vmatprep.subr.mxu0 0.0
    %1816 = vmatpush1.xpose.msra.mxu0 0.0
    %1817 = vmatprep.subr.mxu0 0.0
    %1818 = vmatpush1.xpose.msra.mxu0 0.0
    %1819 = vmatprep.subr.mxu0 0.0
    %1820 = vmatpush1.xpose.msra.mxu0 0.0
    %1821 = vmatprep.mubr.f32.mxu0 0.0
    %1822 = vmatmul.mubr.f32.gmra.mrb[0].mxu0 %v142
    %v1823 = vpop.f32.mrb[0].mxu0
    %v1824 = vadd.f32 %v1754, %v1823
    %v1825 = vpop.f32.mrb[0].mxu0
    %1826 = vdwg.mxu0
    %vm1827 = vcmask 39936
    %1828 = vst.msk [vmem:[#allocation7] sm:$0xff] %vm1827, %v1824
    // Predicated region
    $region22: #{tpu_custom_call.1} parent=1 // pred_check
      _
    $region23: #{tpu_custom_call.1} parent=1 // pred_check_branch
      %1830 = sbr.rel (0) target = $region25
    $region24: #{tpu_custom_call.1} parent=1 // pred_region
      %s1832 = ssub.s32 128, 128
      %1833 = vsyncadd [#allocation4], %s1832
      %s1835 = sshll.u32 [#allocation7], 4
      %s1836 = int_to_ptr.vmem [resolvable:$true] %s1835
      %1838 = dma.vmem_to_hbm [thread:$0]  %s1836, 128, %s3, [#allocation4]
    $region25: #{tpu_custom_call.1} parent=1 // pred_fallthru
      _
    // Predicated region
    $region26: #{tpu_custom_call.1} parent=1 // pred_check
      _
    $region27: #{tpu_custom_call.1} parent=1 // pred_check_branch
      %1840 = sbr.rel (0) target = $region29
    $region28: #{tpu_custom_call.1} parent=1 // pred_region
      %1841 = dma.done [#allocation4], 128
    $region29: #{tpu_custom_call.1} parent=1 // pred_fallthru
      _
    %1842 = vsyncpa [#allocation3], 1
    %1843 = vsyncpa [#allocation6], 1
    %1844 = vsyncpa [#allocation4], 1

</llo_original>
